<compile_context>
chip_gen: v7x
topology: tpu7x:2x2x1
jax: 0.10.0
libtpu: 0.0.40
codegen_flags: <defaults>
</compile_context>

<pallas_src>
import numpy as np
import jax
import jax.numpy as jnp
from jax.experimental import pallas as pl
from jax.experimental.pallas import tpu as pltpu

F32 = jnp.float32


# ----------------------------------------------------------------------------
# Fused forward kernel (single invocation, whole arrays as VMEM blocks)
# ----------------------------------------------------------------------------

def _fused_forward_kernel(
        x_ref, a_ref,
        we1_ref, be1_ref, we2_ref, be2_ref,
        wmu_ref, bmu_ref, wlv_ref, blv_ref, eps_ref,
        wd1_ref, bd1_ref, wd2_ref, bd2_ref,
        wlog_ref, blog_ref, grp_ind_ref, grp_val_ref,
        xout_ref, mu_ref, sigma_ref, logits_ref, kl_ref):
    a = a_ref[...]                                   # [R, R] batch-expanded adjacency

    def gnn_layer(h, w_ref, b_ref):
        # mean-over-neighbors aggregation, then a single fused
        # [x | agg] @ [W_self ; W_neigh] matmul + bias + ReLU.
        agg = jnp.dot(a, h, preferred_element_type=jnp.float32)
        ha = jnp.concatenate([h, agg], axis=-1)      # [R, 2*F_in]
        out = jnp.dot(ha, w_ref[...], preferred_element_type=jnp.float32) + b_ref[...]
        return jnp.maximum(out, 0.0)

    # --- IntersectionGNN encoder (2 layers) --------------------------------
    h = x_ref[...]
    h = gnn_layer(h, we1_ref, be1_ref)
    h = gnn_layer(h, we2_ref, be2_ref)

    # --- Variational encoder layer ------------------------------------------
    mu = jnp.dot(h, wmu_ref[...], preferred_element_type=jnp.float32) + bmu_ref[...]
    lv = jnp.dot(h, wlv_ref[...], preferred_element_type=jnp.float32) + blv_ref[...]
    sigma = jnp.exp(0.5 * lv)
    z = mu + sigma * eps_ref[...]
    # KL(N(mu, sigma) || N(0, 1)); reuse sigma^2 == exp(lv) (saves one EUP exp).
    kl = -0.5 * jnp.sum(1.0 + lv - mu * mu - sigma * sigma)
    mu_ref[...] = mu
    sigma_ref[...] = sigma
    kl_ref[0, 0] = kl                                # scalar -> SMEM

    # --- IntersectionGNN decoder (2 layers) ---------------------------------
    h = gnn_layer(z, wd1_ref, bd1_ref)
    h = gnn_layer(h, wd2_ref, bd2_ref)

    # --- Categorical decoder head -------------------------------------------
    logits = jnp.dot(h, wlog_ref[...], preferred_element_type=jnp.float32) + blog_ref[...]
    logits_ref[...] = logits                         # [R, n_out * n_cat]

    # Softmax expected value per (row, output-feature) group, done with MXU
    # dots against constant block matrices:
    #   denom[r, o] = sum_k exp(l[r, o, k] - m[r])
    #   numer[r, o] = sum_k k * exp(l[r, o, k] - m[r])
    # Per-row shift m[r] is valid for every group (softmax is shift-invariant
    # when numerator and denominator use the same shift).
    m = jnp.max(logits, axis=-1, keepdims=True)
    p = jnp.exp(logits - m)
    denom = jnp.dot(p, grp_ind_ref[...], preferred_element_type=jnp.float32)
    numer = jnp.dot(p, grp_val_ref[...], preferred_element_type=jnp.float32)
    xout_ref[...] = numer / denom                    # lane-dense [R, n_out]


# ----------------------------------------------------------------------------
# Host-side constant builders / parameter init
# ----------------------------------------------------------------------------

def build_adjacency(adj_list, batch):
    """Row-normalized adjacency, batch-expanded: A_big = kron(A_mean, I_batch)."""
    n = len(adj_list)
    a = np.zeros((n, n), dtype=np.float32)
    for i_from, tos in enumerate(adj_list):
        if tos:
            a[i_from, np.asarray(tos)] = 1.0 / float(len(tos))
    a_big = np.kron(a, np.eye(batch, dtype=np.float32))   # [n*batch, n*batch]
    return jnp.asarray(a_big)


def build_group_matrices(n_out, n_cat):
    """Block-indicator / class-value matrices for the categorical expectation."""
    g = np.zeros((n_out * n_cat, n_out), dtype=np.float32)
    v = np.zeros((n_out * n_cat, n_out), dtype=np.float32)
    for o in range(n_out):
        g[o * n_cat:(o + 1) * n_cat, o] = 1.0
        v[o * n_cat:(o + 1) * n_cat, o] = np.arange(n_cat, dtype=np.float32)
    return jnp.asarray(g), jnp.asarray(v)


def init_params(key, n_features, n_hidden, n_out, n_cat):
    sizes = [n_features] * 3                     # as in the PyTorch __init__
    keys = iter(jax.random.split(key, 32))

    def lin(fi, fo):
        scale = 1.0 / np.sqrt(float(fi))
        return jax.random.normal(next(keys), (fi, fo), F32) * scale

    def gnn_layers(size_list):
        layers = []
        for fi, fo in zip(size_list[:-1], size_list[1:]):
            w_self = lin(fi, fo)
            w_neigh = lin(fi, fo)
            w_cat = jnp.concatenate([w_self, w_neigh], axis=0)   # [2*fi, fo]
            b = jnp.zeros((1, fo), F32)
            layers.append((w_cat, b))
        return layers

    return {
        "gnn_encoder": gnn_layers(sizes),
        "gnn_decoder": gnn_layers(list(reversed(sizes))),
        "enc_wmu": lin(sizes[-1], n_hidden),
        "enc_bmu": jnp.zeros((1, n_hidden), F32),
        "enc_wlv": lin(sizes[-1], n_hidden),
        "enc_blv": jnp.zeros((1, n_hidden), F32),
        "dec_w": lin(n_features, n_out * n_cat),
        "dec_b": jnp.zeros((1, n_out * n_cat), F32),
    }


# ----------------------------------------------------------------------------
# Forward wrapper (one pallas_call)
# ----------------------------------------------------------------------------

def gnn_vae_forward(params, x, a_big, eps, grp_ind, grp_val,
                    *, n_hidden, n_out, n_cat):
    """Returns (x_out, kl_div, params_encoder, params_decoder)."""
    n, b, f = x.shape
    r = n * b
    x_flat = x.reshape(r, f)
    eps_flat = eps.reshape(r, n_hidden)

    (we1, be1), (we2, be2) = params["gnn_encoder"]
    (wd1, bd1), (wd2, bd2) = params["gnn_decoder"]

    vmem = pl.BlockSpec(memory_space=pltpu.MemorySpace.VMEM)
    smem = pl.BlockSpec(memory_space=pltpu.MemorySpace.SMEM)

    inputs = (x_flat, a_big,
              we1, be1, we2, be2,
              params["enc_wmu"], params["enc_bmu"],
              params["enc_wlv"], params["enc_blv"], eps_flat,
              wd1, bd1, wd2, bd2,
              params["dec_w"], params["dec_b"],
              grp_ind, grp_val)

    out_shapes = (
        jax.ShapeDtypeStruct((r, n_out), F32),            # x_out (lane-dense)
        jax.ShapeDtypeStruct((r, n_hidden), F32),         # mu
        jax.ShapeDtypeStruct((r, n_hidden), F32),         # sigma
        jax.ShapeDtypeStruct((r, n_out * n_cat), F32),    # decoder logits
        jax.ShapeDtypeStruct((1, 1), F32),                # kl (SMEM scalar)
    )
    out_specs = (vmem, vmem, vmem, vmem, smem)

    x_out_f, mu_f, sigma_f, logits_f, kl = pl.pallas_call(
        _fused_forward_kernel,
        out_shape=out_shapes,
        in_specs=[vmem] * len(inputs),
        out_specs=out_specs,
    )(*inputs)

    x_out = x_out_f.reshape(n, b, n_out)
    kl_div = kl[0, 0]
    params_encoder = [mu_f.reshape(n, b, n_hidden),
                      sigma_f.reshape(n, b, n_hidden)]
    params_decoder = [logits_f.reshape(n, b, n_out, n_cat)]
    return x_out, kl_div, params_encoder, params_decoder


# ----------------------------------------------------------------------------
# Example run
# ----------------------------------------------------------------------------

if __name__ == "__main__":
    # Small, module-consistent shapes.
    adj_list = [[1, 5], [0, 2], [1, 3], [2, 4], [3, 5], [4, 0]]   # 6-node ring
    n_nodes = len(adj_list)
    batch = 2
    n_features = 8
    n_hidden = n_features        # module default: n_hidden = sizes[-1]
    n_out = n_features           # module default: n_out = n_features
    n_cat = 30                   # VAECategoricalDistr(30)

    key = jax.random.PRNGKey(0)
    k_x, k_eps, k_params = jax.random.split(key, 3)

    x = jax.random.normal(k_x, (n_nodes, batch, n_features), F32)
    eps = jax.random.normal(k_eps, (n_nodes, batch, n_hidden), F32)
    params = init_params(k_params, n_features, n_hidden, n_out, n_cat)
    a_big = build_adjacency(adj_list, batch)
    grp_ind, grp_val = build_group_matrices(n_out, n_cat)

    x_out, kl_div, params_enc, params_dec = gnn_vae_forward(
        params, x, a_big, eps, grp_ind, grp_val,
        n_hidden=n_hidden, n_out=n_out, n_cat=n_cat)

    jax.block_until_ready((x_out, kl_div, params_enc, params_dec))

    assert x_out.shape == (n_nodes, batch, n_out)
    assert kl_div.shape == ()
    assert params_enc[0].shape == (n_nodes, batch, n_hidden)
    assert params_enc[1].shape == (n_nodes, batch, n_hidden)
    assert params_dec[0].shape == (n_nodes, batch, n_out, n_cat)
    assert bool(jnp.all(jnp.isfinite(x_out)))
    assert bool(jnp.isfinite(kl_div))

    print("KERNEL_OK")
</pallas_src>

<mosaic_0001>
module attributes {stable_mosaic.version = 11 : i64} {
  func.func @_fused_forward_kernel(%arg0: memref<12x8xf32, #tpu.memory_space<vmem>>, %arg1: memref<12x12xf32, #tpu.memory_space<vmem>>, %arg2: memref<16x8xf32, #tpu.memory_space<vmem>>, %arg3: memref<1x8xf32, #tpu.memory_space<vmem>>, %arg4: memref<16x8xf32, #tpu.memory_space<vmem>>, %arg5: memref<1x8xf32, #tpu.memory_space<vmem>>, %arg6: memref<8x8xf32, #tpu.memory_space<vmem>>, %arg7: memref<1x8xf32, #tpu.memory_space<vmem>>, %arg8: memref<8x8xf32, #tpu.memory_space<vmem>>, %arg9: memref<1x8xf32, #tpu.memory_space<vmem>>, %arg10: memref<12x8xf32, #tpu.memory_space<vmem>>, %arg11: memref<16x8xf32, #tpu.memory_space<vmem>>, %arg12: memref<1x8xf32, #tpu.memory_space<vmem>>, %arg13: memref<16x8xf32, #tpu.memory_space<vmem>>, %arg14: memref<1x8xf32, #tpu.memory_space<vmem>>, %arg15: memref<8x240xf32, #tpu.memory_space<vmem>>, %arg16: memref<1x240xf32, #tpu.memory_space<vmem>>, %arg17: memref<240x8xf32, #tpu.memory_space<vmem>>, %arg18: memref<240x8xf32, #tpu.memory_space<vmem>>, %arg19: memref<12x8xf32, #tpu.memory_space<vmem>>, %arg20: memref<12x8xf32, #tpu.memory_space<vmem>>, %arg21: memref<12x8xf32, #tpu.memory_space<vmem>>, %arg22: memref<12x240xf32, #tpu.memory_space<vmem>>, %arg23: memref<1x1xf32, #tpu.memory_space<smem>>) attributes {dimension_semantics = [], scalar_prefetch = 0 : i64, scratch_operands = 0 : i64, tpu.core_type = #tpu.core_type<tc>} {
    %c0 = arith.constant 0 : index
    %c0_0 = arith.constant 0 : index
    %0 = vector.load %arg1[%c0, %c0_0] : memref<12x12xf32, #tpu.memory_space<vmem>>, vector<12x12xf32>
    %c0_1 = arith.constant 0 : index
    %c0_2 = arith.constant 0 : index
    %1 = vector.load %arg0[%c0_1, %c0_2] : memref<12x8xf32, #tpu.memory_space<vmem>>, vector<12x8xf32>
    %cst = arith.constant dense<0.000000e+00> : vector<12x8xf32>
    %2 = tpu.matmul %0, %1, %cst {dimension_numbers = #tpu.dot_dimension_numbers<[1], [0], [0], [1], [0, 0, 1, 1], [], []>} : vector<12x12xf32>, vector<12x8xf32>, vector<12x8xf32> -> vector<12x8xf32>
    %3 = tpu.concatenate %1, %2 in 1 : vector<12x8xf32>, vector<12x8xf32> -> vector<12x16xf32>
    %c0_3 = arith.constant 0 : index
    %c0_4 = arith.constant 0 : index
    %4 = vector.load %arg2[%c0_3, %c0_4] : memref<16x8xf32, #tpu.memory_space<vmem>>, vector<16x8xf32>
    %cst_5 = arith.constant dense<0.000000e+00> : vector<12x8xf32>
    %5 = tpu.matmul %3, %4, %cst_5 {dimension_numbers = #tpu.dot_dimension_numbers<[1], [0], [0], [1], [0, 0, 1, 1], [], []>} : vector<12x16xf32>, vector<16x8xf32>, vector<12x8xf32> -> vector<12x8xf32>
    %c0_6 = arith.constant 0 : index
    %c0_7 = arith.constant 0 : index
    %6 = vector.load %arg3[%c0_6, %c0_7] : memref<1x8xf32, #tpu.memory_space<vmem>>, vector<1x8xf32>
    %7 = vector.broadcast %6 : vector<1x8xf32> to vector<12x8xf32>
    %8 = arith.addf %5, %7 : vector<12x8xf32>
    %cst_8 = arith.constant 0.000000e+00 : f32
    %9 = vector.broadcast %cst_8 : f32 to vector<12x8xf32>
    %10 = arith.maximumf %8, %9 : vector<12x8xf32>
    %cst_9 = arith.constant dense<0.000000e+00> : vector<12x8xf32>
    %11 = tpu.matmul %0, %10, %cst_9 {dimension_numbers = #tpu.dot_dimension_numbers<[1], [0], [0], [1], [0, 0, 1, 1], [], []>} : vector<12x12xf32>, vector<12x8xf32>, vector<12x8xf32> -> vector<12x8xf32>
    %12 = tpu.concatenate %10, %11 in 1 : vector<12x8xf32>, vector<12x8xf32> -> vector<12x16xf32>
    %c0_10 = arith.constant 0 : index
    %c0_11 = arith.constant 0 : index
    %13 = vector.load %arg4[%c0_10, %c0_11] : memref<16x8xf32, #tpu.memory_space<vmem>>, vector<16x8xf32>
    %cst_12 = arith.constant dense<0.000000e+00> : vector<12x8xf32>
    %14 = tpu.matmul %12, %13, %cst_12 {dimension_numbers = #tpu.dot_dimension_numbers<[1], [0], [0], [1], [0, 0, 1, 1], [], []>} : vector<12x16xf32>, vector<16x8xf32>, vector<12x8xf32> -> vector<12x8xf32>
    %c0_13 = arith.constant 0 : index
    %c0_14 = arith.constant 0 : index
    %15 = vector.load %arg5[%c0_13, %c0_14] : memref<1x8xf32, #tpu.memory_space<vmem>>, vector<1x8xf32>
    %16 = vector.broadcast %15 : vector<1x8xf32> to vector<12x8xf32>
    %17 = arith.addf %14, %16 : vector<12x8xf32>
    %cst_15 = arith.constant 0.000000e+00 : f32
    %18 = vector.broadcast %cst_15 : f32 to vector<12x8xf32>
    %19 = arith.maximumf %17, %18 : vector<12x8xf32>
    %c0_16 = arith.constant 0 : index
    %c0_17 = arith.constant 0 : index
    %20 = vector.load %arg6[%c0_16, %c0_17] : memref<8x8xf32, #tpu.memory_space<vmem>>, vector<8x8xf32>
    %cst_18 = arith.constant dense<0.000000e+00> : vector<12x8xf32>
    %21 = tpu.matmul %19, %20, %cst_18 {dimension_numbers = #tpu.dot_dimension_numbers<[1], [0], [0], [1], [0, 0, 1, 1], [], []>} : vector<12x8xf32>, vector<8x8xf32>, vector<12x8xf32> -> vector<12x8xf32>
    %c0_19 = arith.constant 0 : index
    %c0_20 = arith.constant 0 : index
    %22 = vector.load %arg7[%c0_19, %c0_20] : memref<1x8xf32, #tpu.memory_space<vmem>>, vector<1x8xf32>
    %23 = vector.broadcast %22 : vector<1x8xf32> to vector<12x8xf32>
    %24 = arith.addf %21, %23 : vector<12x8xf32>
    %c0_21 = arith.constant 0 : index
    %c0_22 = arith.constant 0 : index
    %25 = vector.load %arg8[%c0_21, %c0_22] : memref<8x8xf32, #tpu.memory_space<vmem>>, vector<8x8xf32>
    %cst_23 = arith.constant dense<0.000000e+00> : vector<12x8xf32>
    %26 = tpu.matmul %19, %25, %cst_23 {dimension_numbers = #tpu.dot_dimension_numbers<[1], [0], [0], [1], [0, 0, 1, 1], [], []>} : vector<12x8xf32>, vector<8x8xf32>, vector<12x8xf32> -> vector<12x8xf32>
    %c0_24 = arith.constant 0 : index
    %c0_25 = arith.constant 0 : index
    %27 = vector.load %arg9[%c0_24, %c0_25] : memref<1x8xf32, #tpu.memory_space<vmem>>, vector<1x8xf32>
    %28 = vector.broadcast %27 : vector<1x8xf32> to vector<12x8xf32>
    %29 = arith.addf %26, %28 : vector<12x8xf32>
    %cst_26 = arith.constant 5.000000e-01 : f32
    %30 = vector.broadcast %cst_26 : f32 to vector<12x8xf32>
    %31 = arith.mulf %30, %29 : vector<12x8xf32>
    %32 = math.exp %31 : vector<12x8xf32>
    %c0_27 = arith.constant 0 : index
    %c0_28 = arith.constant 0 : index
    %33 = vector.load %arg10[%c0_27, %c0_28] : memref<12x8xf32, #tpu.memory_space<vmem>>, vector<12x8xf32>
    %34 = arith.mulf %32, %33 : vector<12x8xf32>
    %35 = arith.addf %24, %34 : vector<12x8xf32>
    %cst_29 = arith.constant 1.000000e+00 : f32
    %36 = vector.broadcast %cst_29 : f32 to vector<12x8xf32>
    %37 = arith.addf %36, %29 : vector<12x8xf32>
    %38 = arith.mulf %24, %24 : vector<12x8xf32>
    %39 = arith.subf %37, %38 : vector<12x8xf32>
    %40 = arith.mulf %32, %32 : vector<12x8xf32>
    %41 = arith.subf %39, %40 : vector<12x8xf32>
    %42 = vector.shape_cast %41 : vector<12x8xf32> to vector<1x12x8xf32>
    %cst_30 = arith.constant dense<0.000000e+00> : vector<1xf32>
    %43 = vector.multi_reduction <add>, %42, %cst_30 [1, 2] : vector<1x12x8xf32> to vector<1xf32>
    %44 = vector.shape_cast %43 : vector<1xf32> to vector<1x1x1xf32>
    %45 = vector.extract %44[0, 0, 0] : f32 from vector<1x1x1xf32>
    %cst_31 = arith.constant -5.000000e-01 : f32
    %46 = arith.mulf %cst_31, %45 : f32
    %c0_32 = arith.constant 0 : index
    %c0_33 = arith.constant 0 : index
    %47 = vector.load %arg20[%c0_32, %c0_33] : memref<12x8xf32, #tpu.memory_space<vmem>>, vector<12x8xf32>
    tpu.vector_store %arg20[%c0_32, %c0_33], %24 {strides = array<i32>} : memref<12x8xf32, #tpu.memory_space<vmem>>, vector<12x8xf32>,
    %c0_34 = arith.constant 0 : index
    %c0_35 = arith.constant 0 : index
    %48 = vector.load %arg21[%c0_34, %c0_35] : memref<12x8xf32, #tpu.memory_space<vmem>>, vector<12x8xf32>
    tpu.vector_store %arg21[%c0_34, %c0_35], %32 {strides = array<i32>} : memref<12x8xf32, #tpu.memory_space<vmem>>, vector<12x8xf32>,
    %c0_36 = arith.constant 0 : index
    %c0_37 = arith.constant 0 : index
    %49 = memref.load %arg23[%c0_36, %c0_37] : memref<1x1xf32, #tpu.memory_space<smem>>
    memref.store %46, %arg23[%c0_36, %c0_37] : memref<1x1xf32, #tpu.memory_space<smem>>
    %cst_38 = arith.constant dense<0.000000e+00> : vector<12x8xf32>
    %50 = tpu.matmul %0, %35, %cst_38 {dimension_numbers = #tpu.dot_dimension_numbers<[1], [0], [0], [1], [0, 0, 1, 1], [], []>} : vector<12x12xf32>, vector<12x8xf32>, vector<12x8xf32> -> vector<12x8xf32>
    %51 = tpu.concatenate %35, %50 in 1 : vector<12x8xf32>, vector<12x8xf32> -> vector<12x16xf32>
    %c0_39 = arith.constant 0 : index
    %c0_40 = arith.constant 0 : index
    %52 = vector.load %arg11[%c0_39, %c0_40] : memref<16x8xf32, #tpu.memory_space<vmem>>, vector<16x8xf32>
    %cst_41 = arith.constant dense<0.000000e+00> : vector<12x8xf32>
    %53 = tpu.matmul %51, %52, %cst_41 {dimension_numbers = #tpu.dot_dimension_numbers<[1], [0], [0], [1], [0, 0, 1, 1], [], []>} : vector<12x16xf32>, vector<16x8xf32>, vector<12x8xf32> -> vector<12x8xf32>
    %c0_42 = arith.constant 0 : index
    %c0_43 = arith.constant 0 : index
    %54 = vector.load %arg12[%c0_42, %c0_43] : memref<1x8xf32, #tpu.memory_space<vmem>>, vector<1x8xf32>
    %55 = vector.broadcast %54 : vector<1x8xf32> to vector<12x8xf32>
    %56 = arith.addf %53, %55 : vector<12x8xf32>
    %cst_44 = arith.constant 0.000000e+00 : f32
    %57 = vector.broadcast %cst_44 : f32 to vector<12x8xf32>
    %58 = arith.maximumf %56, %57 : vector<12x8xf32>
    %cst_45 = arith.constant dense<0.000000e+00> : vector<12x8xf32>
    %59 = tpu.matmul %0, %58, %cst_45 {dimension_numbers = #tpu.dot_dimension_numbers<[1], [0], [0], [1], [0, 0, 1, 1], [], []>} : vector<12x12xf32>, vector<12x8xf32>, vector<12x8xf32> -> vector<12x8xf32>
    %60 = tpu.concatenate %58, %59 in 1 : vector<12x8xf32>, vector<12x8xf32> -> vector<12x16xf32>
    %c0_46 = arith.constant 0 : index
    %c0_47 = arith.constant 0 : index
    %61 = vector.load %arg13[%c0_46, %c0_47] : memref<16x8xf32, #tpu.memory_space<vmem>>, vector<16x8xf32>
    %cst_48 = arith.constant dense<0.000000e+00> : vector<12x8xf32>
    %62 = tpu.matmul %60, %61, %cst_48 {dimension_numbers = #tpu.dot_dimension_numbers<[1], [0], [0], [1], [0, 0, 1, 1], [], []>} : vector<12x16xf32>, vector<16x8xf32>, vector<12x8xf32> -> vector<12x8xf32>
    %c0_49 = arith.constant 0 : index
    %c0_50 = arith.constant 0 : index
    %63 = vector.load %arg14[%c0_49, %c0_50] : memref<1x8xf32, #tpu.memory_space<vmem>>, vector<1x8xf32>
    %64 = vector.broadcast %63 : vector<1x8xf32> to vector<12x8xf32>
    %65 = arith.addf %62, %64 : vector<12x8xf32>
    %cst_51 = arith.constant 0.000000e+00 : f32
    %66 = vector.broadcast %cst_51 : f32 to vector<12x8xf32>
    %67 = arith.maximumf %65, %66 : vector<12x8xf32>
    %c0_52 = arith.constant 0 : index
    %c0_53 = arith.constant 0 : index
    %68 = vector.load %arg15[%c0_52, %c0_53] : memref<8x240xf32, #tpu.memory_space<vmem>>, vector<8x240xf32>
    %cst_54 = arith.constant dense<0.000000e+00> : vector<12x240xf32>
    %69 = tpu.matmul %67, %68, %cst_54 {dimension_numbers = #tpu.dot_dimension_numbers<[1], [0], [0], [1], [0, 0, 1, 1], [], []>} : vector<12x8xf32>, vector<8x240xf32>, vector<12x240xf32> -> vector<12x240xf32>
    %c0_55 = arith.constant 0 : index
    %c0_56 = arith.constant 0 : index
    %70 = vector.load %arg16[%c0_55, %c0_56] : memref<1x240xf32, #tpu.memory_space<vmem>>, vector<1x240xf32>
    %71 = vector.broadcast %70 : vector<1x240xf32> to vector<12x240xf32>
    %72 = arith.addf %69, %71 : vector<12x240xf32>
    %c0_57 = arith.constant 0 : index
    %c0_58 = arith.constant 0 : index
    %73 = vector.load %arg22[%c0_57, %c0_58] : memref<12x240xf32, #tpu.memory_space<vmem>>, vector<12x240xf32>
    tpu.vector_store %arg22[%c0_57, %c0_58], %72 {strides = array<i32>} : memref<12x240xf32, #tpu.memory_space<vmem>>, vector<12x240xf32>,
    %cst_59 = arith.constant dense<0xFF800000> : vector<12xf32>
    %74 = vector.multi_reduction <maximumf>, %72, %cst_59 [1] : vector<12x240xf32> to vector<12xf32>
    %75 = vector.shape_cast %74 : vector<12xf32> to vector<12x1xf32>
    %76 = vector.broadcast %75 : vector<12x1xf32> to vector<12x240xf32>
    %77 = arith.subf %72, %76 : vector<12x240xf32>
    %78 = math.exp %77 : vector<12x240xf32>
    %c0_60 = arith.constant 0 : index
    %c0_61 = arith.constant 0 : index
    %79 = vector.load %arg17[%c0_60, %c0_61] : memref<240x8xf32, #tpu.memory_space<vmem>>, vector<240x8xf32>
    %cst_62 = arith.constant dense<0.000000e+00> : vector<12x8xf32>
    %80 = tpu.matmul %78, %79, %cst_62 {dimension_numbers = #tpu.dot_dimension_numbers<[1], [0], [0], [1], [0, 0, 1, 1], [], []>} : vector<12x240xf32>, vector<240x8xf32>, vector<12x8xf32> -> vector<12x8xf32>
    %c0_63 = arith.constant 0 : index
    %c0_64 = arith.constant 0 : index
    %81 = vector.load %arg18[%c0_63, %c0_64] : memref<240x8xf32, #tpu.memory_space<vmem>>, vector<240x8xf32>
    %cst_65 = arith.constant dense<0.000000e+00> : vector<12x8xf32>
    %82 = tpu.matmul %78, %81, %cst_65 {dimension_numbers = #tpu.dot_dimension_numbers<[1], [0], [0], [1], [0, 0, 1, 1], [], []>} : vector<12x240xf32>, vector<240x8xf32>, vector<12x8xf32> -> vector<12x8xf32>
    %83 = arith.divf %82, %80 : vector<12x8xf32>
    %c0_66 = arith.constant 0 : index
    %c0_67 = arith.constant 0 : index
    %84 = vector.load %arg19[%c0_66, %c0_67] : memref<12x8xf32, #tpu.memory_space<vmem>>, vector<12x8xf32>
    tpu.vector_store %arg19[%c0_66, %c0_67], %83 {strides = array<i32>} : memref<12x8xf32, #tpu.memory_space<vmem>>, vector<12x8xf32>,
    return
  }
}

</mosaic_0001>

<llo_original>
// kernel: tpu_custom_call.1
$region0: #{tpu_custom_call.1}
  #allocation0 [shape = 'u32[]', space=smem, size = 0x4, offset = 0x4, fixed_abs, tag = 'smem constant byte address 0x4 - core index']
  #allocation1 [shape = 'u32[144,128]{1,0:T(1,128)}', space=vmem, size = 0x12000, scoped, tag = 'internal scratch']
  %s0 = inlined_call_operand.vmem [shape: f32[12,8], index: 0, kind: input, shape index: {}]
  %s1 = inlined_call_operand.vmem [shape: f32[12,12], index: 1, kind: input, shape index: {}]
  %s2 = inlined_call_operand.vmem [shape: f32[16,8], index: 2, kind: input, shape index: {}]
  %s3 = inlined_call_operand.vmem [shape: f32[1,8], index: 3, kind: input, shape index: {}]
  %s4 = inlined_call_operand.vmem [shape: f32[16,8], index: 4, kind: input, shape index: {}]
  %s5 = inlined_call_operand.vmem [shape: f32[1,8], index: 5, kind: input, shape index: {}]
  %s6 = inlined_call_operand.vmem [shape: f32[8,8], index: 6, kind: input, shape index: {}]
  %s7 = inlined_call_operand.vmem [shape: f32[1,8], index: 7, kind: input, shape index: {}]
  %s8 = inlined_call_operand.vmem [shape: f32[8,8], index: 8, kind: input, shape index: {}]
  %s9 = inlined_call_operand.vmem [shape: f32[1,8], index: 9, kind: input, shape index: {}]
  %s10 = inlined_call_operand.vmem [shape: f32[12,8], index: 10, kind: input, shape index: {}]
  %s11 = inlined_call_operand.vmem [shape: f32[16,8], index: 11, kind: input, shape index: {}]
  %s12 = inlined_call_operand.vmem [shape: f32[1,8], index: 12, kind: input, shape index: {}]
  %s13 = inlined_call_operand.vmem [shape: f32[16,8], index: 13, kind: input, shape index: {}]
  %s14 = inlined_call_operand.vmem [shape: f32[1,8], index: 14, kind: input, shape index: {}]
  %s15 = inlined_call_operand.vmem [shape: f32[8,240], index: 15, kind: input, shape index: {}]
  %s16 = inlined_call_operand.vmem [shape: f32[1,240], index: 16, kind: input, shape index: {}]
  %s17 = inlined_call_operand.vmem [shape: f32[240,8], index: 17, kind: input, shape index: {}]
  %s18 = inlined_call_operand.vmem [shape: f32[240,8], index: 18, kind: input, shape index: {}]
  %s19 = inlined_call_operand.vmem [shape: f32[12,8], index: 19, kind: output, shape index: {0}]
  %s20 = inlined_call_operand.vmem [shape: f32[12,8], index: 20, kind: output, shape index: {1}]
  %s21 = inlined_call_operand.vmem [shape: f32[12,8], index: 21, kind: output, shape index: {2}]
  %s22 = inlined_call_operand.hbm [shape: f32[12,240], index: 22, kind: output, shape index: {3}]
  %s23 = inlined_call_operand.hbm [shape: f32[1,1], index: 23, kind: output, shape index: {4}]
  %24 = xla_tuple %s19, %s20, %s21, %s22, %s23
  %s25 = sld [smem:[#allocation0]]
  $region118: #{tpu_custom_call.1} parent=0
    _
  %s27 = ssub.s32 1, %s25
  %s28 = scalar_select 0, %s27, %s25
  $region1: #{tpu_custom_call.1} parent=0
    #allocation2 [shape = 'u8[16384]{0}', space=vmem, size = 0x4000, scoped, tag = 'output window, operand 3, single buffered']
    #allocation3 [shape = 's32[1]{0}', space=sflag, size = 0x4, scoped, tag = 'scoped memory for tpu_custom_call.1']
    #allocation4 [shape = 's32[1]{0}', space=sflag, size = 0x4, scoped, tag = 'scoped memory for tpu_custom_call.1']
    #allocation5 [shape = 'u8[512]{0}', space=smem, size = 0x200, scoped, tag = 'output window, operand 4, single buffered']
    %29 = vsyncpa [#allocation3], 0
    %30 = vsyncpa [#allocation4], 0
    // Predicated region
    $region2: #{tpu_custom_call.1} parent=1 // pred_check
      _
    $region3: #{tpu_custom_call.1} parent=1 // pred_check_branch
      %32 = sbr.rel (0) target = $region5
    $region4: #{tpu_custom_call.1} parent=1 // pred_region
      _
    $region5: #{tpu_custom_call.1} parent=1 // pred_fallthru
      _
    // Predicated region
    $region6: #{tpu_custom_call.1} parent=1 // pred_check
      _
    $region7: #{tpu_custom_call.1} parent=1 // pred_check_branch
      %34 = sbr.rel (0) target = $region9
    $region8: #{tpu_custom_call.1} parent=1 // pred_region
      _
    $region9: #{tpu_custom_call.1} parent=1 // pred_fallthru
      _
    // Predicated region
    $region10: #{tpu_custom_call.1} parent=1 // pred_check
      _
    $region11: #{tpu_custom_call.1} parent=1 // pred_check_branch
      %36 = sbr.rel (0) target = $region13
    $region12: #{tpu_custom_call.1} parent=1 // pred_region
      _
    $region13: #{tpu_custom_call.1} parent=1 // pred_fallthru
      _
    // Predicated region
    $region14: #{tpu_custom_call.1} parent=1 // pred_check
      _
    $region15: #{tpu_custom_call.1} parent=1 // pred_check_branch
      %38 = sbr.rel (0) target = $region17
    $region16: #{tpu_custom_call.1} parent=1 // pred_region
      _
    $region17: #{tpu_custom_call.1} parent=1 // pred_fallthru
      _
    // Predicated region
    $region18: #{tpu_custom_call.1} parent=1 // pred_check
      _
    $region19: #{tpu_custom_call.1} parent=1 // pred_check_branch
      %40 = sbr.rel (0) target = $region21
    $region20: #{tpu_custom_call.1} parent=1 // pred_region
      _
    $region21: #{tpu_custom_call.1} parent=1 // pred_fallthru
      _
    // Predicated region
    $region22: #{tpu_custom_call.1} parent=1 // pred_check
      _
    $region23: #{tpu_custom_call.1} parent=1 // pred_check_branch
      %42 = sbr.rel (0) target = $region25
    $region24: #{tpu_custom_call.1} parent=1 // pred_region
      _
    $region25: #{tpu_custom_call.1} parent=1 // pred_fallthru
      _
    // Predicated region
    $region26: #{tpu_custom_call.1} parent=1 // pred_check
      _
    $region27: #{tpu_custom_call.1} parent=1 // pred_check_branch
      %44 = sbr.rel (0) target = $region29
    $region28: #{tpu_custom_call.1} parent=1 // pred_region
      _
    $region29: #{tpu_custom_call.1} parent=1 // pred_fallthru
      _
    // Predicated region
    $region30: #{tpu_custom_call.1} parent=1 // pred_check
      _
    $region31: #{tpu_custom_call.1} parent=1 // pred_check_branch
      %46 = sbr.rel (0) target = $region33
    $region32: #{tpu_custom_call.1} parent=1 // pred_region
      _
    $region33: #{tpu_custom_call.1} parent=1 // pred_fallthru
      _
    // Predicated region
    $region34: #{tpu_custom_call.1} parent=1 // pred_check
      _
    $region35: #{tpu_custom_call.1} parent=1 // pred_check_branch
      %48 = sbr.rel (0) target = $region37
    $region36: #{tpu_custom_call.1} parent=1 // pred_region
      _
    $region37: #{tpu_custom_call.1} parent=1 // pred_fallthru
      _
    // Predicated region
    $region38: #{tpu_custom_call.1} parent=1 // pred_check
      _
    $region39: #{tpu_custom_call.1} parent=1 // pred_check_branch
      %50 = sbr.rel (0) target = $region41
    $region40: #{tpu_custom_call.1} parent=1 // pred_region
      _
    $region41: #{tpu_custom_call.1} parent=1 // pred_fallthru
      _
    // Predicated region
    $region42: #{tpu_custom_call.1} parent=1 // pred_check
      _
    $region43: #{tpu_custom_call.1} parent=1 // pred_check_branch
      %52 = sbr.rel (0) target = $region45
    $region44: #{tpu_custom_call.1} parent=1 // pred_region
      _
    $region45: #{tpu_custom_call.1} parent=1 // pred_fallthru
      _
    // Predicated region
    $region46: #{tpu_custom_call.1} parent=1 // pred_check
      _
    $region47: #{tpu_custom_call.1} parent=1 // pred_check_branch
      %54 = sbr.rel (0) target = $region49
    $region48: #{tpu_custom_call.1} parent=1 // pred_region
      _
    $region49: #{tpu_custom_call.1} parent=1 // pred_fallthru
      _
    // Predicated region
    $region50: #{tpu_custom_call.1} parent=1 // pred_check
      _
    $region51: #{tpu_custom_call.1} parent=1 // pred_check_branch
      %56 = sbr.rel (0) target = $region53
    $region52: #{tpu_custom_call.1} parent=1 // pred_region
      _
    $region53: #{tpu_custom_call.1} parent=1 // pred_fallthru
      _
    // Predicated region
    $region54: #{tpu_custom_call.1} parent=1 // pred_check
      _
    $region55: #{tpu_custom_call.1} parent=1 // pred_check_branch
      %58 = sbr.rel (0) target = $region57
    $region56: #{tpu_custom_call.1} parent=1 // pred_region
      _
    $region57: #{tpu_custom_call.1} parent=1 // pred_fallthru
      _
    // Predicated region
    $region58: #{tpu_custom_call.1} parent=1 // pred_check
      _
    $region59: #{tpu_custom_call.1} parent=1 // pred_check_branch
      %60 = sbr.rel (0) target = $region61
    $region60: #{tpu_custom_call.1} parent=1 // pred_region
      _
    $region61: #{tpu_custom_call.1} parent=1 // pred_fallthru
      _
    // Predicated region
    $region62: #{tpu_custom_call.1} parent=1 // pred_check
      _
    $region63: #{tpu_custom_call.1} parent=1 // pred_check_branch
      %62 = sbr.rel (0) target = $region65
    $region64: #{tpu_custom_call.1} parent=1 // pred_region
      _
    $region65: #{tpu_custom_call.1} parent=1 // pred_fallthru
      _
    // Predicated region
    $region66: #{tpu_custom_call.1} parent=1 // pred_check
      _
    $region67: #{tpu_custom_call.1} parent=1 // pred_check_branch
      %64 = sbr.rel (0) target = $region69
    $region68: #{tpu_custom_call.1} parent=1 // pred_region
      _
    $region69: #{tpu_custom_call.1} parent=1 // pred_fallthru
      _
    // Predicated region
    $region70: #{tpu_custom_call.1} parent=1 // pred_check
      _
    $region71: #{tpu_custom_call.1} parent=1 // pred_check_branch
      %66 = sbr.rel (0) target = $region73
    $region72: #{tpu_custom_call.1} parent=1 // pred_region
      _
    $region73: #{tpu_custom_call.1} parent=1 // pred_fallthru
      _
    // Predicated region
    $region74: #{tpu_custom_call.1} parent=1 // pred_check
      _
    $region75: #{tpu_custom_call.1} parent=1 // pred_check_branch
      %68 = sbr.rel (0) target = $region77
    $region76: #{tpu_custom_call.1} parent=1 // pred_region
      _
    $region77: #{tpu_custom_call.1} parent=1 // pred_fallthru
      _
    %v69 = vld [vmem:[%s1] sm:$0xff]
    %v70 = vld [vmem:[%s1 + $0x8] sm:$0xf]
    %v71 = vld [vmem:[%s0] sm:$0xff]
    %v72 = vld [vmem:[%s0 + $0x8] sm:$0xf]
    %vm73 = vcmask 97280
    %v75 = vsel %vm73, %v69, 0
    %v78 = vsel %vm73, %v70, 0
    %vm80 = vcmask 1043456
    %v82 = vsel %vm80, %v72, 0
    %84 = vmatprep.subr.mxu0 0.0
    %85 = vmatpush1.msra.mxu0 %v71
    %86 = vmatprep.subr.mxu0 0.0
    %87 = vmatpush1.msra.mxu0 %v82
    %88 = vmatprep.subr.mxu0 0.0
    %89 = vmatpush1.msra.mxu0 0.0
    %90 = vmatprep.subr.mxu0 0.0
    %91 = vmatpush1.msra.mxu0 0.0
    %92 = vmatprep.subr.mxu0 0.0
    %93 = vmatpush1.msra.mxu0 0.0
    %94 = vmatprep.subr.mxu0 0.0
    %95 = vmatpush1.msra.mxu0 0.0
    %96 = vmatprep.subr.mxu0 0.0
    %97 = vmatpush1.msra.mxu0 0.0
    %98 = vmatprep.subr.mxu0 0.0
    %99 = vmatpush1.msra.mxu0 0.0
    %100 = vmatprep.subr.mxu0 0.0
    %101 = vmatpush1.msra.mxu0 0.0
    %102 = vmatprep.subr.mxu0 0.0
    %103 = vmatpush1.msra.mxu0 0.0
    %104 = vmatprep.subr.mxu0 0.0
    %105 = vmatpush1.msra.mxu0 0.0
    %106 = vmatprep.subr.mxu0 0.0
    %107 = vmatpush1.msra.mxu0 0.0
    %108 = vmatprep.subr.mxu0 0.0
    %109 = vmatpush1.msra.mxu0 0.0
    %110 = vmatprep.subr.mxu0 0.0
    %111 = vmatpush1.msra.mxu0 0.0
    %112 = vmatprep.subr.mxu0 0.0
    %113 = vmatpush1.msra.mxu0 0.0
    %114 = vmatprep.subr.mxu0 0.0
    %115 = vmatpush1.msra.mxu0 0.0
    %116 = vmatprep.subr.mxu0 0.0
    %117 = vmatpush1.msra.mxu0 0.0
    %118 = vmatprep.subr.mxu0 0.0
    %119 = vmatpush1.msra.mxu0 0.0
    %120 = vmatprep.subr.mxu0 0.0
    %121 = vmatpush1.msra.mxu0 0.0
    %122 = vmatprep.subr.mxu0 0.0
    %123 = vmatpush1.msra.mxu0 0.0
    %124 = vmatprep.subr.mxu0 0.0
    %125 = vmatpush1.msra.mxu0 0.0
    %126 = vmatprep.subr.mxu0 0.0
    %127 = vmatpush1.msra.mxu0 0.0
    %128 = vmatprep.subr.mxu0 0.0
    %129 = vmatpush1.msra.mxu0 0.0
    %130 = vmatprep.subr.mxu0 0.0
    %131 = vmatpush1.msra.mxu0 0.0
    %132 = vmatprep.subr.mxu0 0.0
    %133 = vmatpush1.msra.mxu0 0.0
    %134 = vmatprep.subr.mxu0 0.0
    %135 = vmatpush1.msra.mxu0 0.0
    %136 = vmatprep.subr.mxu0 0.0
    %137 = vmatpush1.msra.mxu0 0.0
    %138 = vmatprep.subr.mxu0 0.0
    %139 = vmatpush1.msra.mxu0 0.0
    %140 = vmatprep.subr.mxu0 0.0
    %141 = vmatpush1.msra.mxu0 0.0
    %142 = vmatprep.subr.mxu0 0.0
    %143 = vmatpush1.msra.mxu0 0.0
    %144 = vmatprep.subr.mxu0 0.0
    %145 = vmatpush1.msra.mxu0 0.0
    %146 = vmatprep.subr.mxu0 0.0
    %147 = vmatpush1.msra.mxu0 0.0
    %148 = vmatprep.mubr.f32.mxu0 0.0
    %149 = vmatmul.mubr.f32.gmra.mrb[0].mxu0 %v75
    %v150 = vpop.f32.mrb[0].mxu0
    %v151 = vadd.f32 0.0, %v150
    %v152 = vpop.f32.mrb[0].mxu0
    %153 = vmatprep.mubr.f32.mxu0 0.0
    %154 = vmatmul.mubr.f32.gmra.mrb[0].mxu0 %v78
    %v155 = vpop.f32.mrb[0].mxu0
    %v156 = vadd.f32 0.0, %v155
    %v157 = vpop.f32.mrb[0].mxu0
    %158 = vdwg.mxu0
    %161 = vrot.lane.b32.xlu0 %v151, 8
    %v162 = vpop.permute.xlu0 %161
    %163 = vrot.lane.b32.xlu0 %v156, 8
    %v164 = vpop.permute.xlu0 %163
    %vm167 = vcmask 64512
    %v168 = vsel %vm167, %v71, %v162
    %v169 = vsel %vm167, %v72, %v164
    %v170 = vld [vmem:[%s2] sm:$0xff]
    %v171 = vld [vmem:[%s2 + $0x8] sm:$0xff]
    %v172 = vld [vmem:[%s3] sm:$0x1]
    %v174 = vlaneseq
    %v175 = vshrl.u32 %v174, 7
    %v176 = vsub.s32 0, %v175
    %v177 = vrot.slane %v172, %v176
    %vm179 = vcmask 130048
    %v181 = vsel %vm179, %v168, 0
    %v184 = vsel %vm179, %v169, 0
    %186 = vmatprep.subr.mxu0 0.0
    %187 = vmatpush1.msra.mxu0 %v170
    %188 = vmatprep.subr.mxu0 0.0
    %189 = vmatpush1.msra.mxu0 %v171
    %190 = vmatprep.subr.mxu0 0.0
    %191 = vmatpush1.msra.mxu0 0.0
    %192 = vmatprep.subr.mxu0 0.0
    %193 = vmatpush1.msra.mxu0 0.0
    %194 = vmatprep.subr.mxu0 0.0
    %195 = vmatpush1.msra.mxu0 0.0
    %196 = vmatprep.subr.mxu0 0.0
    %197 = vmatpush1.msra.mxu0 0.0
    %198 = vmatprep.subr.mxu0 0.0
    %199 = vmatpush1.msra.mxu0 0.0
    %200 = vmatprep.subr.mxu0 0.0
    %201 = vmatpush1.msra.mxu0 0.0
    %202 = vmatprep.subr.mxu0 0.0
    %203 = vmatpush1.msra.mxu0 0.0
    %204 = vmatprep.subr.mxu0 0.0
    %205 = vmatpush1.msra.mxu0 0.0
    %206 = vmatprep.subr.mxu0 0.0
    %207 = vmatpush1.msra.mxu0 0.0
    %208 = vmatprep.subr.mxu0 0.0
    %209 = vmatpush1.msra.mxu0 0.0
    %210 = vmatprep.subr.mxu0 0.0
    %211 = vmatpush1.msra.mxu0 0.0
    %212 = vmatprep.subr.mxu0 0.0
    %213 = vmatpush1.msra.mxu0 0.0
    %214 = vmatprep.subr.mxu0 0.0
    %215 = vmatpush1.msra.mxu0 0.0
    %216 = vmatprep.subr.mxu0 0.0
    %217 = vmatpush1.msra.mxu0 0.0
    %218 = vmatprep.subr.mxu0 0.0
    %219 = vmatpush1.msra.mxu0 0.0
    %220 = vmatprep.subr.mxu0 0.0
    %221 = vmatpush1.msra.mxu0 0.0
    %222 = vmatprep.subr.mxu0 0.0
    %223 = vmatpush1.msra.mxu0 0.0
    %224 = vmatprep.subr.mxu0 0.0
    %225 = vmatpush1.msra.mxu0 0.0
    %226 = vmatprep.subr.mxu0 0.0
    %227 = vmatpush1.msra.mxu0 0.0
    %228 = vmatprep.subr.mxu0 0.0
    %229 = vmatpush1.msra.mxu0 0.0
    %230 = vmatprep.subr.mxu0 0.0
    %231 = vmatpush1.msra.mxu0 0.0
    %232 = vmatprep.subr.mxu0 0.0
    %233 = vmatpush1.msra.mxu0 0.0
    %234 = vmatprep.subr.mxu0 0.0
    %235 = vmatpush1.msra.mxu0 0.0
    %236 = vmatprep.subr.mxu0 0.0
    %237 = vmatpush1.msra.mxu0 0.0
    %238 = vmatprep.subr.mxu0 0.0
    %239 = vmatpush1.msra.mxu0 0.0
    %240 = vmatprep.subr.mxu0 0.0
    %241 = vmatpush1.msra.mxu0 0.0
    %242 = vmatprep.subr.mxu0 0.0
    %243 = vmatpush1.msra.mxu0 0.0
    %244 = vmatprep.subr.mxu0 0.0
    %245 = vmatpush1.msra.mxu0 0.0
    %246 = vmatprep.subr.mxu0 0.0
    %247 = vmatpush1.msra.mxu0 0.0
    %248 = vmatprep.subr.mxu0 0.0
    %249 = vmatpush1.msra.mxu0 0.0
    %250 = vmatprep.mubr.f32.mxu0 0.0
    %251 = vmatmul.mubr.f32.gmra.mrb[0].mxu0 %v181
    %v252 = vpop.f32.mrb[0].mxu0
    %v253 = vadd.f32 %v177, %v252
    %v254 = vpop.f32.mrb[0].mxu0
    %255 = vmatprep.mubr.f32.mxu0 0.0
    %256 = vmatmul.mubr.f32.gmra.mrb[0].mxu0 %v184
    %v257 = vpop.f32.mrb[0].mxu0
    %v258 = vadd.f32 %v177, %v257
    %v259 = vpop.f32.mrb[0].mxu0
    %260 = vdwg.mxu0
    %v261 = vmax.f32 %v253, 0.0
    %v262 = vmax.f32 %v258, 0.0
    %v264 = vsel %vm80, %v262, 0
    %266 = vmatprep.subr.mxu0 0.0
    %267 = vmatpush1.msra.mxu0 %v261
    %268 = vmatprep.subr.mxu0 0.0
    %269 = vmatpush1.msra.mxu0 %v264
    %270 = vmatprep.subr.mxu0 0.0
    %271 = vmatpush1.msra.mxu0 0.0
    %272 = vmatprep.subr.mxu0 0.0
    %273 = vmatpush1.msra.mxu0 0.0
    %274 = vmatprep.subr.mxu0 0.0
    %275 = vmatpush1.msra.mxu0 0.0
    %276 = vmatprep.subr.mxu0 0.0
    %277 = vmatpush1.msra.mxu0 0.0
    %278 = vmatprep.subr.mxu0 0.0
    %279 = vmatpush1.msra.mxu0 0.0
    %280 = vmatprep.subr.mxu0 0.0
    %281 = vmatpush1.msra.mxu0 0.0
    %282 = vmatprep.subr.mxu0 0.0
    %283 = vmatpush1.msra.mxu0 0.0
    %284 = vmatprep.subr.mxu0 0.0
    %285 = vmatpush1.msra.mxu0 0.0
    %286 = vmatprep.subr.mxu0 0.0
    %287 = vmatpush1.msra.mxu0 0.0
    %288 = vmatprep.subr.mxu0 0.0
    %289 = vmatpush1.msra.mxu0 0.0
    %290 = vmatprep.subr.mxu0 0.0
    %291 = vmatpush1.msra.mxu0 0.0
    %292 = vmatprep.subr.mxu0 0.0
    %293 = vmatpush1.msra.mxu0 0.0
    %294 = vmatprep.subr.mxu0 0.0
    %295 = vmatpush1.msra.mxu0 0.0
    %296 = vmatprep.subr.mxu0 0.0
    %297 = vmatpush1.msra.mxu0 0.0
    %298 = vmatprep.subr.mxu0 0.0
    %299 = vmatpush1.msra.mxu0 0.0
    %300 = vmatprep.subr.mxu0 0.0
    %301 = vmatpush1.msra.mxu0 0.0
    %302 = vmatprep.subr.mxu0 0.0
    %303 = vmatpush1.msra.mxu0 0.0
    %304 = vmatprep.subr.mxu0 0.0
    %305 = vmatpush1.msra.mxu0 0.0
    %306 = vmatprep.subr.mxu0 0.0
    %307 = vmatpush1.msra.mxu0 0.0
    %308 = vmatprep.subr.mxu0 0.0
    %309 = vmatpush1.msra.mxu0 0.0
    %310 = vmatprep.subr.mxu0 0.0
    %311 = vmatpush1.msra.mxu0 0.0
    %312 = vmatprep.subr.mxu0 0.0
    %313 = vmatpush1.msra.mxu0 0.0
    %314 = vmatprep.subr.mxu0 0.0
    %315 = vmatpush1.msra.mxu0 0.0
    %316 = vmatprep.subr.mxu0 0.0
    %317 = vmatpush1.msra.mxu0 0.0
    %318 = vmatprep.subr.mxu0 0.0
    %319 = vmatpush1.msra.mxu0 0.0
    %320 = vmatprep.subr.mxu0 0.0
    %321 = vmatpush1.msra.mxu0 0.0
    %322 = vmatprep.subr.mxu0 0.0
    %323 = vmatpush1.msra.mxu0 0.0
    %324 = vmatprep.subr.mxu0 0.0
    %325 = vmatpush1.msra.mxu0 0.0
    %326 = vmatprep.subr.mxu0 0.0
    %327 = vmatpush1.msra.mxu0 0.0
    %328 = vmatprep.subr.mxu0 0.0
    %329 = vmatpush1.msra.mxu0 0.0
    %330 = vmatprep.mubr.f32.mxu0 0.0
    %331 = vmatmul.mubr.f32.gmra.mrb[0].mxu0 %v75
    %v332 = vpop.f32.mrb[0].mxu0
    %v333 = vadd.f32 0.0, %v332
    %v334 = vpop.f32.mrb[0].mxu0
    %335 = vmatprep.mubr.f32.mxu0 0.0
    %336 = vmatmul.mubr.f32.gmra.mrb[0].mxu0 %v78
    %v337 = vpop.f32.mrb[0].mxu0
    %v338 = vadd.f32 0.0, %v337
    %v339 = vpop.f32.mrb[0].mxu0
    %340 = vdwg.mxu0
    %343 = vrot.lane.b32.xlu0 %v333, 8
    %v344 = vpop.permute.xlu0 %343
    %345 = vrot.lane.b32.xlu0 %v338, 8
    %v346 = vpop.permute.xlu0 %345
    %v349 = vsel %vm167, %v261, %v344
    %v350 = vsel %vm167, %v262, %v346
    %v351 = vld [vmem:[%s4] sm:$0xff]
    %v352 = vld [vmem:[%s4 + $0x8] sm:$0xff]
    %v353 = vld [vmem:[%s5] sm:$0x1]
    %v355 = vlaneseq
    %v356 = vshrl.u32 %v355, 7
    %v357 = vsub.s32 0, %v356
    %v358 = vrot.slane %v353, %v357
    %v361 = vsel %vm179, %v349, 0
    %v364 = vsel %vm179, %v350, 0
    %366 = vmatprep.subr.mxu0 0.0
    %367 = vmatpush1.msra.mxu0 %v351
    %368 = vmatprep.subr.mxu0 0.0
    %369 = vmatpush1.msra.mxu0 %v352
    %370 = vmatprep.subr.mxu0 0.0
    %371 = vmatpush1.msra.mxu0 0.0
    %372 = vmatprep.subr.mxu0 0.0
    %373 = vmatpush1.msra.mxu0 0.0
    %374 = vmatprep.subr.mxu0 0.0
    %375 = vmatpush1.msra.mxu0 0.0
    %376 = vmatprep.subr.mxu0 0.0
    %377 = vmatpush1.msra.mxu0 0.0
    %378 = vmatprep.subr.mxu0 0.0
    %379 = vmatpush1.msra.mxu0 0.0
    %380 = vmatprep.subr.mxu0 0.0
    %381 = vmatpush1.msra.mxu0 0.0
    %382 = vmatprep.subr.mxu0 0.0
    %383 = vmatpush1.msra.mxu0 0.0
    %384 = vmatprep.subr.mxu0 0.0
    %385 = vmatpush1.msra.mxu0 0.0
    %386 = vmatprep.subr.mxu0 0.0
    %387 = vmatpush1.msra.mxu0 0.0
    %388 = vmatprep.subr.mxu0 0.0
    %389 = vmatpush1.msra.mxu0 0.0
    %390 = vmatprep.subr.mxu0 0.0
    %391 = vmatpush1.msra.mxu0 0.0
    %392 = vmatprep.subr.mxu0 0.0
    %393 = vmatpush1.msra.mxu0 0.0
    %394 = vmatprep.subr.mxu0 0.0
    %395 = vmatpush1.msra.mxu0 0.0
    %396 = vmatprep.subr.mxu0 0.0
    %397 = vmatpush1.msra.mxu0 0.0
    %398 = vmatprep.subr.mxu0 0.0
    %399 = vmatpush1.msra.mxu0 0.0
    %400 = vmatprep.subr.mxu0 0.0
    %401 = vmatpush1.msra.mxu0 0.0
    %402 = vmatprep.subr.mxu0 0.0
    %403 = vmatpush1.msra.mxu0 0.0
    %404 = vmatprep.subr.mxu0 0.0
    %405 = vmatpush1.msra.mxu0 0.0
    %406 = vmatprep.subr.mxu0 0.0
    %407 = vmatpush1.msra.mxu0 0.0
    %408 = vmatprep.subr.mxu0 0.0
    %409 = vmatpush1.msra.mxu0 0.0
    %410 = vmatprep.subr.mxu0 0.0
    %411 = vmatpush1.msra.mxu0 0.0
    %412 = vmatprep.subr.mxu0 0.0
    %413 = vmatpush1.msra.mxu0 0.0
    %414 = vmatprep.subr.mxu0 0.0
    %415 = vmatpush1.msra.mxu0 0.0
    %416 = vmatprep.subr.mxu0 0.0
    %417 = vmatpush1.msra.mxu0 0.0
    %418 = vmatprep.subr.mxu0 0.0
    %419 = vmatpush1.msra.mxu0 0.0
    %420 = vmatprep.subr.mxu0 0.0
    %421 = vmatpush1.msra.mxu0 0.0
    %422 = vmatprep.subr.mxu0 0.0
    %423 = vmatpush1.msra.mxu0 0.0
    %424 = vmatprep.subr.mxu0 0.0
    %425 = vmatpush1.msra.mxu0 0.0
    %426 = vmatprep.subr.mxu0 0.0
    %427 = vmatpush1.msra.mxu0 0.0
    %428 = vmatprep.subr.mxu0 0.0
    %429 = vmatpush1.msra.mxu0 0.0
    %430 = vmatprep.mubr.f32.mxu0 0.0
    %431 = vmatmul.mubr.f32.gmra.mrb[0].mxu0 %v361
    %v432 = vpop.f32.mrb[0].mxu0
    %v433 = vadd.f32 %v358, %v432
    %v434 = vpop.f32.mrb[0].mxu0
    %435 = vmatprep.mubr.f32.mxu0 0.0
    %436 = vmatmul.mubr.f32.gmra.mrb[0].mxu0 %v364
    %v437 = vpop.f32.mrb[0].mxu0
    %v438 = vadd.f32 %v358, %v437
    %v439 = vpop.f32.mrb[0].mxu0
    %440 = vdwg.mxu0
    %v441 = vmax.f32 %v433, 0.0
    %v442 = vmax.f32 %v438, 0.0
    %v443 = vld [vmem:[%s6] sm:$0xff]
    %v444 = vld [vmem:[%s7] sm:$0x1]
    %v446 = vlaneseq
    %v447 = vshrl.u32 %v446, 7
    %v448 = vsub.s32 0, %v447
    %v449 = vrot.slane %v444, %v448
    %v452 = vsel %vm167, %v441, 0
    %v455 = vsel %vm167, %v442, 0
    %457 = vmatprep.subr.mxu0 0.0
    %458 = vmatpush1.msra.mxu0 %v443
    %459 = vmatprep.subr.mxu0 0.0
    %460 = vmatpush1.msra.mxu0 0.0
    %461 = vmatprep.subr.mxu0 0.0
    %462 = vmatpush1.msra.mxu0 0.0
    %463 = vmatprep.subr.mxu0 0.0
    %464 = vmatpush1.msra.mxu0 0.0
    %465 = vmatprep.subr.mxu0 0.0
    %466 = vmatpush1.msra.mxu0 0.0
    %467 = vmatprep.subr.mxu0 0.0
    %468 = vmatpush1.msra.mxu0 0.0
    %469 = vmatprep.subr.mxu0 0.0
    %470 = vmatpush1.msra.mxu0 0.0
    %471 = vmatprep.subr.mxu0 0.0
    %472 = vmatpush1.msra.mxu0 0.0
    %473 = vmatprep.subr.mxu0 0.0
    %474 = vmatpush1.msra.mxu0 0.0
    %475 = vmatprep.subr.mxu0 0.0
    %476 = vmatpush1.msra.mxu0 0.0
    %477 = vmatprep.subr.mxu0 0.0
    %478 = vmatpush1.msra.mxu0 0.0
    %479 = vmatprep.subr.mxu0 0.0
    %480 = vmatpush1.msra.mxu0 0.0
    %481 = vmatprep.subr.mxu0 0.0
    %482 = vmatpush1.msra.mxu0 0.0
    %483 = vmatprep.subr.mxu0 0.0
    %484 = vmatpush1.msra.mxu0 0.0
    %485 = vmatprep.subr.mxu0 0.0
    %486 = vmatpush1.msra.mxu0 0.0
    %487 = vmatprep.subr.mxu0 0.0
    %488 = vmatpush1.msra.mxu0 0.0
    %489 = vmatprep.subr.mxu0 0.0
    %490 = vmatpush1.msra.mxu0 0.0
    %491 = vmatprep.subr.mxu0 0.0
    %492 = vmatpush1.msra.mxu0 0.0
    %493 = vmatprep.subr.mxu0 0.0
    %494 = vmatpush1.msra.mxu0 0.0
    %495 = vmatprep.subr.mxu0 0.0
    %496 = vmatpush1.msra.mxu0 0.0
    %497 = vmatprep.subr.mxu0 0.0
    %498 = vmatpush1.msra.mxu0 0.0
    %499 = vmatprep.subr.mxu0 0.0
    %500 = vmatpush1.msra.mxu0 0.0
    %501 = vmatprep.subr.mxu0 0.0
    %502 = vmatpush1.msra.mxu0 0.0
    %503 = vmatprep.subr.mxu0 0.0
    %504 = vmatpush1.msra.mxu0 0.0
    %505 = vmatprep.subr.mxu0 0.0
    %506 = vmatpush1.msra.mxu0 0.0
    %507 = vmatprep.subr.mxu0 0.0
    %508 = vmatpush1.msra.mxu0 0.0
    %509 = vmatprep.subr.mxu0 0.0
    %510 = vmatpush1.msra.mxu0 0.0
    %511 = vmatprep.subr.mxu0 0.0
    %512 = vmatpush1.msra.mxu0 0.0
    %513 = vmatprep.subr.mxu0 0.0
    %514 = vmatpush1.msra.mxu0 0.0
    %515 = vmatprep.subr.mxu0 0.0
    %516 = vmatpush1.msra.mxu0 0.0
    %517 = vmatprep.subr.mxu0 0.0
    %518 = vmatpush1.msra.mxu0 0.0
    %519 = vmatprep.subr.mxu0 0.0
    %520 = vmatpush1.msra.mxu0 0.0
    %521 = vmatprep.mubr.f32.mxu0 0.0
    %522 = vmatmul.mubr.f32.gmra.mrb[0].mxu0 %v452
    %v523 = vpop.f32.mrb[0].mxu0
    %v524 = vadd.f32 %v449, %v523
    %v525 = vpop.f32.mrb[0].mxu0
    %526 = vmatprep.mubr.f32.mxu0 0.0
    %527 = vmatmul.mubr.f32.gmra.mrb[0].mxu0 %v455
    %v528 = vpop.f32.mrb[0].mxu0
    %v529 = vadd.f32 %v449, %v528
    %v530 = vpop.f32.mrb[0].mxu0
    %531 = vdwg.mxu0
    %v532 = vld [vmem:[%s8] sm:$0xff]
    %v533 = vld [vmem:[%s9] sm:$0x1]
    %v535 = vlaneseq
    %v536 = vshrl.u32 %v535, 7
    %v537 = vsub.s32 0, %v536
    %v538 = vrot.slane %v533, %v537
    %540 = vmatprep.subr.mxu0 0.0
    %541 = vmatpush1.msra.mxu0 %v532
    %542 = vmatprep.subr.mxu0 0.0
    %543 = vmatpush1.msra.mxu0 0.0
    %544 = vmatprep.subr.mxu0 0.0
    %545 = vmatpush1.msra.mxu0 0.0
    %546 = vmatprep.subr.mxu0 0.0
    %547 = vmatpush1.msra.mxu0 0.0
    %548 = vmatprep.subr.mxu0 0.0
    %549 = vmatpush1.msra.mxu0 0.0
    %550 = vmatprep.subr.mxu0 0.0
    %551 = vmatpush1.msra.mxu0 0.0
    %552 = vmatprep.subr.mxu0 0.0
    %553 = vmatpush1.msra.mxu0 0.0
    %554 = vmatprep.subr.mxu0 0.0
    %555 = vmatpush1.msra.mxu0 0.0
    %556 = vmatprep.subr.mxu0 0.0
    %557 = vmatpush1.msra.mxu0 0.0
    %558 = vmatprep.subr.mxu0 0.0
    %559 = vmatpush1.msra.mxu0 0.0
    %560 = vmatprep.subr.mxu0 0.0
    %561 = vmatpush1.msra.mxu0 0.0
    %562 = vmatprep.subr.mxu0 0.0
    %563 = vmatpush1.msra.mxu0 0.0
    %564 = vmatprep.subr.mxu0 0.0
    %565 = vmatpush1.msra.mxu0 0.0
    %566 = vmatprep.subr.mxu0 0.0
    %567 = vmatpush1.msra.mxu0 0.0
    %568 = vmatprep.subr.mxu0 0.0
    %569 = vmatpush1.msra.mxu0 0.0
    %570 = vmatprep.subr.mxu0 0.0
    %571 = vmatpush1.msra.mxu0 0.0
    %572 = vmatprep.subr.mxu0 0.0
    %573 = vmatpush1.msra.mxu0 0.0
    %574 = vmatprep.subr.mxu0 0.0
    %575 = vmatpush1.msra.mxu0 0.0
    %576 = vmatprep.subr.mxu0 0.0
    %577 = vmatpush1.msra.mxu0 0.0
    %578 = vmatprep.subr.mxu0 0.0
    %579 = vmatpush1.msra.mxu0 0.0
    %580 = vmatprep.subr.mxu0 0.0
    %581 = vmatpush1.msra.mxu0 0.0
    %582 = vmatprep.subr.mxu0 0.0
    %583 = vmatpush1.msra.mxu0 0.0
    %584 = vmatprep.subr.mxu0 0.0
    %585 = vmatpush1.msra.mxu0 0.0
    %586 = vmatprep.subr.mxu0 0.0
    %587 = vmatpush1.msra.mxu0 0.0
    %588 = vmatprep.subr.mxu0 0.0
    %589 = vmatpush1.msra.mxu0 0.0
    %590 = vmatprep.subr.mxu0 0.0
    %591 = vmatpush1.msra.mxu0 0.0
    %592 = vmatprep.subr.mxu0 0.0
    %593 = vmatpush1.msra.mxu0 0.0
    %594 = vmatprep.subr.mxu0 0.0
    %595 = vmatpush1.msra.mxu0 0.0
    %596 = vmatprep.subr.mxu0 0.0
    %597 = vmatpush1.msra.mxu0 0.0
    %598 = vmatprep.subr.mxu0 0.0
    %599 = vmatpush1.msra.mxu0 0.0
    %600 = vmatprep.subr.mxu0 0.0
    %601 = vmatpush1.msra.mxu0 0.0
    %602 = vmatprep.subr.mxu0 0.0
    %603 = vmatpush1.msra.mxu0 0.0
    %604 = vmatprep.mubr.f32.mxu0 0.0
    %605 = vmatmul.mubr.f32.gmra.mrb[0].mxu0 %v452
    %v606 = vpop.f32.mrb[0].mxu0
    %v607 = vadd.f32 %v538, %v606
    %v608 = vpop.f32.mrb[0].mxu0
    %609 = vmatprep.mubr.f32.mxu0 0.0
    %610 = vmatmul.mubr.f32.gmra.mrb[0].mxu0 %v455
    %v611 = vpop.f32.mrb[0].mxu0
    %v612 = vadd.f32 %v538, %v611
    %v613 = vpop.f32.mrb[0].mxu0
    %614 = vdwg.mxu0
    %v615 = vmul.f32 %v607, 0.5
    %v616 = vmul.f32 %v612, 0.5
    %v617 = vmul.f32 %v615, 1.442695
    %v618 = vpow.pop %v617
    %v619 = vmul.f32 %v616, 1.442695
    %v620 = vpow.pop %v619
    %v621 = vld [vmem:[%s10] sm:$0xff]
    %v622 = vld [vmem:[%s10 + $0x8] sm:$0xf]
    %v623 = vmul.f32 %v618, %v621
    %v624 = vmul.f32 %v620, %v622
    %v625 = vadd.f32 %v524, %v623
    %v626 = vadd.f32 %v529, %v624
    %v627 = vadd.f32 %v607, 1.0
    %v628 = vadd.f32 %v612, 1.0
    %v629 = vmul.f32 %v524, %v524
    %v630 = vmul.f32 %v529, %v529
    %v631 = vsub.f32 %v627, %v629
    %v632 = vsub.f32 %v628, %v630
    %v633 = vmul.f32 %v618, %v618
    %v634 = vmul.f32 %v620, %v620
    %v635 = vsub.f32 %v631, %v633
    %v636 = vsub.f32 %v632, %v634
    %v637 = vsel %vm167, %v635, 0.0
    %vm638 = vcmask 60416
    %v639 = vsel %vm638, %v636, 0.0
    %v640 = vadd.f32 %v637, %v639
    %641 = vadd.xlane.f32.xlu0 %v640
    %v642 = vpop.xlane.xlu0 %641
    %v643 = vrot.slane %v642, 4
    %v644 = vadd.f32 %v642, %v643
    %v645 = vrot.slane %v644, 2
    %v646 = vadd.f32 %v644, %v645
    %v647 = vrot.slane %v646, 1
    %v648 = vadd.f32 %v646, %v647
    %s649 = vtos %v648
    %s650 = smul.f32 %s649, -0.5
    %651 = vst.msk [vmem:[%s20] sm:$0xff] %vm167, %v524
    %652 = vst.msk [vmem:[%s20 + $0x8] sm:$0xf] %vm638, %v529
    %653 = vst.msk [vmem:[%s21] sm:$0xff] %vm167, %v618
    %654 = vst.msk [vmem:[%s21 + $0x8] sm:$0xf] %vm638, %v620
    %s655 = scalar_lea.smem [#allocation5], 0
    %656 = sst [smem:[%s655]] %s650
    %v658 = vsel %vm80, %v626, 0
    %660 = vmatprep.subr.mxu0 0.0
    %661 = vmatpush1.msra.mxu0 %v625
    %662 = vmatprep.subr.mxu0 0.0
    %663 = vmatpush1.msra.mxu0 %v658
    %664 = vmatprep.subr.mxu0 0.0
    %665 = vmatpush1.msra.mxu0 0.0
    %666 = vmatprep.subr.mxu0 0.0
    %667 = vmatpush1.msra.mxu0 0.0
    %668 = vmatprep.subr.mxu0 0.0
    %669 = vmatpush1.msra.mxu0 0.0
    %670 = vmatprep.subr.mxu0 0.0
    %671 = vmatpush1.msra.mxu0 0.0
    %672 = vmatprep.subr.mxu0 0.0
    %673 = vmatpush1.msra.mxu0 0.0
    %674 = vmatprep.subr.mxu0 0.0
    %675 = vmatpush1.msra.mxu0 0.0
    %676 = vmatprep.subr.mxu0 0.0
    %677 = vmatpush1.msra.mxu0 0.0
    %678 = vmatprep.subr.mxu0 0.0
    %679 = vmatpush1.msra.mxu0 0.0
    %680 = vmatprep.subr.mxu0 0.0
    %681 = vmatpush1.msra.mxu0 0.0
    %682 = vmatprep.subr.mxu0 0.0
    %683 = vmatpush1.msra.mxu0 0.0
    %684 = vmatprep.subr.mxu0 0.0
    %685 = vmatpush1.msra.mxu0 0.0
    %686 = vmatprep.subr.mxu0 0.0
    %687 = vmatpush1.msra.mxu0 0.0
    %688 = vmatprep.subr.mxu0 0.0
    %689 = vmatpush1.msra.mxu0 0.0
    %690 = vmatprep.subr.mxu0 0.0
    %691 = vmatpush1.msra.mxu0 0.0
    %692 = vmatprep.subr.mxu0 0.0
    %693 = vmatpush1.msra.mxu0 0.0
    %694 = vmatprep.subr.mxu0 0.0
    %695 = vmatpush1.msra.mxu0 0.0
    %696 = vmatprep.subr.mxu0 0.0
    %697 = vmatpush1.msra.mxu0 0.0
    %698 = vmatprep.subr.mxu0 0.0
    %699 = vmatpush1.msra.mxu0 0.0
    %700 = vmatprep.subr.mxu0 0.0
    %701 = vmatpush1.msra.mxu0 0.0
    %702 = vmatprep.subr.mxu0 0.0
    %703 = vmatpush1.msra.mxu0 0.0
    %704 = vmatprep.subr.mxu0 0.0
    %705 = vmatpush1.msra.mxu0 0.0
    %706 = vmatprep.subr.mxu0 0.0
    %707 = vmatpush1.msra.mxu0 0.0
    %708 = vmatprep.subr.mxu0 0.0
    %709 = vmatpush1.msra.mxu0 0.0
    %710 = vmatprep.subr.mxu0 0.0
    %711 = vmatpush1.msra.mxu0 0.0
    %712 = vmatprep.subr.mxu0 0.0
    %713 = vmatpush1.msra.mxu0 0.0
    %714 = vmatprep.subr.mxu0 0.0
    %715 = vmatpush1.msra.mxu0 0.0
    %716 = vmatprep.subr.mxu0 0.0
    %717 = vmatpush1.msra.mxu0 0.0
    %718 = vmatprep.subr.mxu0 0.0
    %719 = vmatpush1.msra.mxu0 0.0
    %720 = vmatprep.subr.mxu0 0.0
    %721 = vmatpush1.msra.mxu0 0.0
    %722 = vmatprep.subr.mxu0 0.0
    %723 = vmatpush1.msra.mxu0 0.0
    %724 = vmatprep.mubr.f32.mxu0 0.0
    %725 = vmatmul.mubr.f32.gmra.mrb[0].mxu0 %v75
    %v726 = vpop.f32.mrb[0].mxu0
    %v727 = vadd.f32 0.0, %v726
    %v728 = vpop.f32.mrb[0].mxu0
    %729 = vmatprep.mubr.f32.mxu0 0.0
    %730 = vmatmul.mubr.f32.gmra.mrb[0].mxu0 %v78
    %v731 = vpop.f32.mrb[0].mxu0
    %v732 = vadd.f32 0.0, %v731
    %v733 = vpop.f32.mrb[0].mxu0
    %734 = vdwg.mxu0
    %737 = vrot.lane.b32.xlu0 %v727, 8
    %v738 = vpop.permute.xlu0 %737
    %739 = vrot.lane.b32.xlu0 %v732, 8
    %v740 = vpop.permute.xlu0 %739
    %v743 = vsel %vm167, %v625, %v738
    %v744 = vsel %vm167, %v626, %v740
    %v745 = vld [vmem:[%s11] sm:$0xff]
    %v746 = vld [vmem:[%s11 + $0x8] sm:$0xff]
    %v747 = vld [vmem:[%s12] sm:$0x1]
    %v749 = vlaneseq
    %v750 = vshrl.u32 %v749, 7
    %v751 = vsub.s32 0, %v750
    %v752 = vrot.slane %v747, %v751
    %v755 = vsel %vm179, %v743, 0
    %v758 = vsel %vm179, %v744, 0
    %760 = vmatprep.subr.mxu0 0.0
    %761 = vmatpush1.msra.mxu0 %v745
    %762 = vmatprep.subr.mxu0 0.0
    %763 = vmatpush1.msra.mxu0 %v746
    %764 = vmatprep.subr.mxu0 0.0
    %765 = vmatpush1.msra.mxu0 0.0
    %766 = vmatprep.subr.mxu0 0.0
    %767 = vmatpush1.msra.mxu0 0.0
    %768 = vmatprep.subr.mxu0 0.0
    %769 = vmatpush1.msra.mxu0 0.0
    %770 = vmatprep.subr.mxu0 0.0
    %771 = vmatpush1.msra.mxu0 0.0
    %772 = vmatprep.subr.mxu0 0.0
    %773 = vmatpush1.msra.mxu0 0.0
    %774 = vmatprep.subr.mxu0 0.0
    %775 = vmatpush1.msra.mxu0 0.0
    %776 = vmatprep.subr.mxu0 0.0
    %777 = vmatpush1.msra.mxu0 0.0
    %778 = vmatprep.subr.mxu0 0.0
    %779 = vmatpush1.msra.mxu0 0.0
    %780 = vmatprep.subr.mxu0 0.0
    %781 = vmatpush1.msra.mxu0 0.0
    %782 = vmatprep.subr.mxu0 0.0
    %783 = vmatpush1.msra.mxu0 0.0
    %784 = vmatprep.subr.mxu0 0.0
    %785 = vmatpush1.msra.mxu0 0.0
    %786 = vmatprep.subr.mxu0 0.0
    %787 = vmatpush1.msra.mxu0 0.0
    %788 = vmatprep.subr.mxu0 0.0
    %789 = vmatpush1.msra.mxu0 0.0
    %790 = vmatprep.subr.mxu0 0.0
    %791 = vmatpush1.msra.mxu0 0.0
    %792 = vmatprep.subr.mxu0 0.0
    %793 = vmatpush1.msra.mxu0 0.0
    %794 = vmatprep.subr.mxu0 0.0
    %795 = vmatpush1.msra.mxu0 0.0
    %796 = vmatprep.subr.mxu0 0.0
    %797 = vmatpush1.msra.mxu0 0.0
    %798 = vmatprep.subr.mxu0 0.0
    %799 = vmatpush1.msra.mxu0 0.0
    %800 = vmatprep.subr.mxu0 0.0
    %801 = vmatpush1.msra.mxu0 0.0
    %802 = vmatprep.subr.mxu0 0.0
    %803 = vmatpush1.msra.mxu0 0.0
    %804 = vmatprep.subr.mxu0 0.0
    %805 = vmatpush1.msra.mxu0 0.0
    %806 = vmatprep.subr.mxu0 0.0
    %807 = vmatpush1.msra.mxu0 0.0
    %808 = vmatprep.subr.mxu0 0.0
    %809 = vmatpush1.msra.mxu0 0.0
    %810 = vmatprep.subr.mxu0 0.0
    %811 = vmatpush1.msra.mxu0 0.0
    %812 = vmatprep.subr.mxu0 0.0
    %813 = vmatpush1.msra.mxu0 0.0
    %814 = vmatprep.subr.mxu0 0.0
    %815 = vmatpush1.msra.mxu0 0.0
    %816 = vmatprep.subr.mxu0 0.0
    %817 = vmatpush1.msra.mxu0 0.0
    %818 = vmatprep.subr.mxu0 0.0
    %819 = vmatpush1.msra.mxu0 0.0
    %820 = vmatprep.subr.mxu0 0.0
    %821 = vmatpush1.msra.mxu0 0.0
    %822 = vmatprep.subr.mxu0 0.0
    %823 = vmatpush1.msra.mxu0 0.0
    %824 = vmatprep.mubr.f32.mxu0 0.0
    %825 = vmatmul.mubr.f32.gmra.mrb[0].mxu0 %v755
    %v826 = vpop.f32.mrb[0].mxu0
    %v827 = vadd.f32 %v752, %v826
    %v828 = vpop.f32.mrb[0].mxu0
    %829 = vmatprep.mubr.f32.mxu0 0.0
    %830 = vmatmul.mubr.f32.gmra.mrb[0].mxu0 %v758
    %v831 = vpop.f32.mrb[0].mxu0
    %v832 = vadd.f32 %v752, %v831
    %v833 = vpop.f32.mrb[0].mxu0
    %834 = vdwg.mxu0
    %v835 = vmax.f32 %v827, 0.0
    %v836 = vmax.f32 %v832, 0.0
    %v838 = vsel %vm80, %v836, 0
    %840 = vmatprep.subr.mxu0 0.0
    %841 = vmatpush1.msra.mxu0 %v835
    %842 = vmatprep.subr.mxu0 0.0
    %843 = vmatpush1.msra.mxu0 %v838
    %844 = vmatprep.subr.mxu0 0.0
    %845 = vmatpush1.msra.mxu0 0.0
    %846 = vmatprep.subr.mxu0 0.0
    %847 = vmatpush1.msra.mxu0 0.0
    %848 = vmatprep.subr.mxu0 0.0
    %849 = vmatpush1.msra.mxu0 0.0
    %850 = vmatprep.subr.mxu0 0.0
    %851 = vmatpush1.msra.mxu0 0.0
    %852 = vmatprep.subr.mxu0 0.0
    %853 = vmatpush1.msra.mxu0 0.0
    %854 = vmatprep.subr.mxu0 0.0
    %855 = vmatpush1.msra.mxu0 0.0
    %856 = vmatprep.subr.mxu0 0.0
    %857 = vmatpush1.msra.mxu0 0.0
    %858 = vmatprep.subr.mxu0 0.0
    %859 = vmatpush1.msra.mxu0 0.0
    %860 = vmatprep.subr.mxu0 0.0
    %861 = vmatpush1.msra.mxu0 0.0
    %862 = vmatprep.subr.mxu0 0.0
    %863 = vmatpush1.msra.mxu0 0.0
    %864 = vmatprep.subr.mxu0 0.0
    %865 = vmatpush1.msra.mxu0 0.0
    %866 = vmatprep.subr.mxu0 0.0
    %867 = vmatpush1.msra.mxu0 0.0
    %868 = vmatprep.subr.mxu0 0.0
    %869 = vmatpush1.msra.mxu0 0.0
    %870 = vmatprep.subr.mxu0 0.0
    %871 = vmatpush1.msra.mxu0 0.0
    %872 = vmatprep.subr.mxu0 0.0
    %873 = vmatpush1.msra.mxu0 0.0
    %874 = vmatprep.subr.mxu0 0.0
    %875 = vmatpush1.msra.mxu0 0.0
    %876 = vmatprep.subr.mxu0 0.0
    %877 = vmatpush1.msra.mxu0 0.0
    %878 = vmatprep.subr.mxu0 0.0
    %879 = vmatpush1.msra.mxu0 0.0
    %880 = vmatprep.subr.mxu0 0.0
    %881 = vmatpush1.msra.mxu0 0.0
    %882 = vmatprep.subr.mxu0 0.0
    %883 = vmatpush1.msra.mxu0 0.0
    %884 = vmatprep.subr.mxu0 0.0
    %885 = vmatpush1.msra.mxu0 0.0
    %886 = vmatprep.subr.mxu0 0.0
    %887 = vmatpush1.msra.mxu0 0.0
    %888 = vmatprep.subr.mxu0 0.0
    %889 = vmatpush1.msra.mxu0 0.0
    %890 = vmatprep.subr.mxu0 0.0
    %891 = vmatpush1.msra.mxu0 0.0
    %892 = vmatprep.subr.mxu0 0.0
    %893 = vmatpush1.msra.mxu0 0.0
    %894 = vmatprep.subr.mxu0 0.0
    %895 = vmatpush1.msra.mxu0 0.0
    %896 = vmatprep.subr.mxu0 0.0
    %897 = vmatpush1.msra.mxu0 0.0
    %898 = vmatprep.subr.mxu0 0.0
    %899 = vmatpush1.msra.mxu0 0.0
    %900 = vmatprep.subr.mxu0 0.0
    %901 = vmatpush1.msra.mxu0 0.0
    %902 = vmatprep.subr.mxu0 0.0
    %903 = vmatpush1.msra.mxu0 0.0
    %904 = vmatprep.mubr.f32.mxu0 0.0
    %905 = vmatmul.mubr.f32.gmra.mrb[0].mxu0 %v75
    %v906 = vpop.f32.mrb[0].mxu0
    %v907 = vadd.f32 0.0, %v906
    %v908 = vpop.f32.mrb[0].mxu0
    %909 = vmatprep.mubr.f32.mxu0 0.0
    %910 = vmatmul.mubr.f32.gmra.mrb[0].mxu0 %v78
    %v911 = vpop.f32.mrb[0].mxu0
    %v912 = vadd.f32 0.0, %v911
    %v913 = vpop.f32.mrb[0].mxu0
    %914 = vdwg.mxu0
    %917 = vrot.lane.b32.xlu0 %v907, 8
    %v918 = vpop.permute.xlu0 %917
    %919 = vrot.lane.b32.xlu0 %v912, 8
    %v920 = vpop.permute.xlu0 %919
    %v923 = vsel %vm167, %v835, %v918
    %v924 = vsel %vm167, %v836, %v920
    %v925 = vld [vmem:[%s13] sm:$0xff]
    %v926 = vld [vmem:[%s13 + $0x8] sm:$0xff]
    %v927 = vld [vmem:[%s14] sm:$0x1]
    %v929 = vlaneseq
    %v930 = vshrl.u32 %v929, 7
    %v931 = vsub.s32 0, %v930
    %v932 = vrot.slane %v927, %v931
    %v935 = vsel %vm179, %v923, 0
    %v938 = vsel %vm179, %v924, 0
    %940 = vmatprep.subr.mxu0 0.0
    %941 = vmatpush1.msra.mxu0 %v925
    %942 = vmatprep.subr.mxu0 0.0
    %943 = vmatpush1.msra.mxu0 %v926
    %944 = vmatprep.subr.mxu0 0.0
    %945 = vmatpush1.msra.mxu0 0.0
    %946 = vmatprep.subr.mxu0 0.0
    %947 = vmatpush1.msra.mxu0 0.0
    %948 = vmatprep.subr.mxu0 0.0
    %949 = vmatpush1.msra.mxu0 0.0
    %950 = vmatprep.subr.mxu0 0.0
    %951 = vmatpush1.msra.mxu0 0.0
    %952 = vmatprep.subr.mxu0 0.0
    %953 = vmatpush1.msra.mxu0 0.0
    %954 = vmatprep.subr.mxu0 0.0
    %955 = vmatpush1.msra.mxu0 0.0
    %956 = vmatprep.subr.mxu0 0.0
    %957 = vmatpush1.msra.mxu0 0.0
    %958 = vmatprep.subr.mxu0 0.0
    %959 = vmatpush1.msra.mxu0 0.0
    %960 = vmatprep.subr.mxu0 0.0
    %961 = vmatpush1.msra.mxu0 0.0
    %962 = vmatprep.subr.mxu0 0.0
    %963 = vmatpush1.msra.mxu0 0.0
    %964 = vmatprep.subr.mxu0 0.0
    %965 = vmatpush1.msra.mxu0 0.0
    %966 = vmatprep.subr.mxu0 0.0
    %967 = vmatpush1.msra.mxu0 0.0
    %968 = vmatprep.subr.mxu0 0.0
    %969 = vmatpush1.msra.mxu0 0.0
    %970 = vmatprep.subr.mxu0 0.0
    %971 = vmatpush1.msra.mxu0 0.0
    %972 = vmatprep.subr.mxu0 0.0
    %973 = vmatpush1.msra.mxu0 0.0
    %974 = vmatprep.subr.mxu0 0.0
    %975 = vmatpush1.msra.mxu0 0.0
    %976 = vmatprep.subr.mxu0 0.0
    %977 = vmatpush1.msra.mxu0 0.0
    %978 = vmatprep.subr.mxu0 0.0
    %979 = vmatpush1.msra.mxu0 0.0
    %980 = vmatprep.subr.mxu0 0.0
    %981 = vmatpush1.msra.mxu0 0.0
    %982 = vmatprep.subr.mxu0 0.0
    %983 = vmatpush1.msra.mxu0 0.0
    %984 = vmatprep.subr.mxu0 0.0
    %985 = vmatpush1.msra.mxu0 0.0
    %986 = vmatprep.subr.mxu0 0.0
    %987 = vmatpush1.msra.mxu0 0.0
    %988 = vmatprep.subr.mxu0 0.0
    %989 = vmatpush1.msra.mxu0 0.0
    %990 = vmatprep.subr.mxu0 0.0
    %991 = vmatpush1.msra.mxu0 0.0
    %992 = vmatprep.subr.mxu0 0.0
    %993 = vmatpush1.msra.mxu0 0.0
    %994 = vmatprep.subr.mxu0 0.0
    %995 = vmatpush1.msra.mxu0 0.0
    %996 = vmatprep.subr.mxu0 0.0
    %997 = vmatpush1.msra.mxu0 0.0
    %998 = vmatprep.subr.mxu0 0.0
    %999 = vmatpush1.msra.mxu0 0.0
    %1000 = vmatprep.subr.mxu0 0.0
    %1001 = vmatpush1.msra.mxu0 0.0
    %1002 = vmatprep.subr.mxu0 0.0
    %1003 = vmatpush1.msra.mxu0 0.0
    %1004 = vmatprep.mubr.f32.mxu0 0.0
    %1005 = vmatmul.mubr.f32.gmra.mrb[0].mxu0 %v935
    %v1006 = vpop.f32.mrb[0].mxu0
    %v1007 = vadd.f32 %v932, %v1006
    %v1008 = vpop.f32.mrb[0].mxu0
    %1009 = vmatprep.mubr.f32.mxu0 0.0
    %1010 = vmatmul.mubr.f32.gmra.mrb[0].mxu0 %v938
    %v1011 = vpop.f32.mrb[0].mxu0
    %v1012 = vadd.f32 %v932, %v1011
    %v1013 = vpop.f32.mrb[0].mxu0
    %1014 = vdwg.mxu0
    %v1015 = vmax.f32 %v1007, 0.0
    %v1016 = vmax.f32 %v1012, 0.0
    %v1017 = vld [vmem:[%s15] sm:$0xff]
    %v1018 = vld [vmem:[%s15 + $0x8] sm:$0xff]
    %v1019 = vld [vmem:[%s16] sm:$0x3]
    %v1021 = vlaneseq
    %v1022 = vshrl.u32 %v1021, 7
    %v1023 = vsub.s32 0, %v1022
    %v1024 = vrot.slane %v1019, %v1023
    %v1025 = vlaneseq
    %v1026 = vshrl.u32 %v1025, 7
    %v1027 = vsub.s32 1, %v1026
    %v1028 = vrot.slane %v1019, %v1027
    %v1032 = vsel %vm167, %v1015, 0
    %v1035 = vsel %vm167, %v1016, 0
    %1037 = vmatprep.subr.mxu0 %v1018
    %1038 = vmatpush1.msra.mxu0 %v1017
    %1039 = vmatprep.subr.mxu0 0.0
    %1040 = vmatpush1.msra.mxu0 0.0
    %1041 = vmatprep.subr.mxu0 0.0
    %1042 = vmatpush1.msra.mxu0 0.0
    %1043 = vmatprep.subr.mxu0 0.0
    %1044 = vmatpush1.msra.mxu0 0.0
    %1045 = vmatprep.subr.mxu0 0.0
    %1046 = vmatpush1.msra.mxu0 0.0
    %1047 = vmatprep.subr.mxu0 0.0
    %1048 = vmatpush1.msra.mxu0 0.0
    %1049 = vmatprep.subr.mxu0 0.0
    %1050 = vmatpush1.msra.mxu0 0.0
    %1051 = vmatprep.subr.mxu0 0.0
    %1052 = vmatpush1.msra.mxu0 0.0
    %1053 = vmatprep.subr.mxu0 0.0
    %1054 = vmatpush1.msra.mxu0 0.0
    %1055 = vmatprep.subr.mxu0 0.0
    %1056 = vmatpush1.msra.mxu0 0.0
    %1057 = vmatprep.subr.mxu0 0.0
    %1058 = vmatpush1.msra.mxu0 0.0
    %1059 = vmatprep.subr.mxu0 0.0
    %1060 = vmatpush1.msra.mxu0 0.0
    %1061 = vmatprep.subr.mxu0 0.0
    %1062 = vmatpush1.msra.mxu0 0.0
    %1063 = vmatprep.subr.mxu0 0.0
    %1064 = vmatpush1.msra.mxu0 0.0
    %1065 = vmatprep.subr.mxu0 0.0
    %1066 = vmatpush1.msra.mxu0 0.0
    %1067 = vmatprep.subr.mxu0 0.0
    %1068 = vmatpush1.msra.mxu0 0.0
    %1069 = vmatprep.subr.mxu0 0.0
    %1070 = vmatpush1.msra.mxu0 0.0
    %1071 = vmatprep.subr.mxu0 0.0
    %1072 = vmatpush1.msra.mxu0 0.0
    %1073 = vmatprep.subr.mxu0 0.0
    %1074 = vmatpush1.msra.mxu0 0.0
    %1075 = vmatprep.subr.mxu0 0.0
    %1076 = vmatpush1.msra.mxu0 0.0
    %1077 = vmatprep.subr.mxu0 0.0
    %1078 = vmatpush1.msra.mxu0 0.0
    %1079 = vmatprep.subr.mxu0 0.0
    %1080 = vmatpush1.msra.mxu0 0.0
    %1081 = vmatprep.subr.mxu0 0.0
    %1082 = vmatpush1.msra.mxu0 0.0
    %1083 = vmatprep.subr.mxu0 0.0
    %1084 = vmatpush1.msra.mxu0 0.0
    %1085 = vmatprep.subr.mxu0 0.0
    %1086 = vmatpush1.msra.mxu0 0.0
    %1087 = vmatprep.subr.mxu0 0.0
    %1088 = vmatpush1.msra.mxu0 0.0
    %1089 = vmatprep.subr.mxu0 0.0
    %1090 = vmatpush1.msra.mxu0 0.0
    %1091 = vmatprep.subr.mxu0 0.0
    %1092 = vmatpush1.msra.mxu0 0.0
    %1093 = vmatprep.subr.mxu0 0.0
    %1094 = vmatpush1.msra.mxu0 0.0
    %1095 = vmatprep.subr.mxu0 0.0
    %1096 = vmatpush1.msra.mxu0 0.0
    %1097 = vmatprep.subr.mxu0 0.0
    %1098 = vmatpush1.msra.mxu0 0.0
    %1099 = vmatprep.subr.mxu0 0.0
    %1100 = vmatpush1.msra.mxu0 0.0
    %1101 = vmatprep.mubr.f32.mxu0 0.0
    %1102 = vmatmul.mubr.f32.gmra.mrb[0].mxu0 %v1032
    %v1103 = vpop.f32.mrb[0].mxu0
    %v1104 = vadd.f32 %v1024, %v1103
    %v1105 = vpop.f32.mrb[0].mxu0
    %v1106 = vadd.f32 %v1028, %v1105
    %1107 = vmatprep.mubr.f32.mxu0 0.0
    %1108 = vmatmul.mubr.f32.gmra.mrb[0].mxu0 %v1035
    %v1109 = vpop.f32.mrb[0].mxu0
    %v1110 = vadd.f32 %v1024, %v1109
    %v1111 = vpop.f32.mrb[0].mxu0
    %v1112 = vadd.f32 %v1028, %v1111
    %1113 = vdwg.mxu0
    %1114 = vst [vmem:[#allocation2] sm:$0xff] %v1104
    %vm1115 = vcmask 916480
    %1116 = vst.msk [vmem:[#allocation2 + $0x8] sm:$0xff] %vm1115, %v1106
    %1117 = vst [vmem:[#allocation2 + $0x10] sm:$0xf] %v1110
    %vm1118 = vcmask 912384
    %1119 = vst.msk [vmem:[#allocation2 + $0x18] sm:$0xf] %vm1118, %v1112
    %v1120 = vsel %vm1115, %v1106, -inf
    %v1121 = vmax.f32 %v1104, %v1120
    %1122 = vmax.xlane.f32.xlu0 %v1121
    %v1123 = vpop.xlane.xlu0 %1122
    %v1124 = vsel %vm80, %v1110, -inf
    %v1125 = vsel %vm1118, %v1112, -inf
    %v1126 = vmax.f32 %v1124, %v1125
    %1127 = vmax.xlane.f32.xlu0 %v1126
    %v1128 = vpop.xlane.xlu0 %1127
    %v1129 = vsub.f32 %v1104, %v1123
    %v1130 = vsub.f32 %v1106, %v1123
    %v1131 = vsub.f32 %v1110, %v1128
    %v1132 = vsub.f32 %v1112, %v1128
    %v1133 = vmul.f32 %v1129, 1.442695
    %v1134 = vpow.pop %v1133
    %v1135 = vmul.f32 %v1130, 1.442695
    %v1136 = vpow.pop %v1135
    %v1137 = vmul.f32 %v1131, 1.442695
    %v1138 = vpow.pop %v1137
    %v1139 = vmul.f32 %v1132, 1.442695
    %v1140 = vpow.pop %v1139
    %v1141 = vld [vmem:[%s17] sm:$0xff]
    %v1142 = vld [vmem:[%s17 + $0x8] sm:$0xff]
    %v1143 = vld [vmem:[%s17 + $0x10] sm:$0xff]
    %v1144 = vld [vmem:[%s17 + $0x18] sm:$0xff]
    %v1145 = vld [vmem:[%s17 + $0x20] sm:$0xff]
    %v1146 = vld [vmem:[%s17 + $0x28] sm:$0xff]
    %v1147 = vld [vmem:[%s17 + $0x30] sm:$0xff]
    %v1148 = vld [vmem:[%s17 + $0x38] sm:$0xff]
    %v1149 = vld [vmem:[%s17 + $0x40] sm:$0xff]
    %v1150 = vld [vmem:[%s17 + $0x48] sm:$0xff]
    %v1151 = vld [vmem:[%s17 + $0x50] sm:$0xff]
    %v1152 = vld [vmem:[%s17 + $0x58] sm:$0xff]
    %v1153 = vld [vmem:[%s17 + $0x60] sm:$0xff]
    %v1154 = vld [vmem:[%s17 + $0x68] sm:$0xff]
    %v1155 = vld [vmem:[%s17 + $0x70] sm:$0xff]
    %v1156 = vld [vmem:[%s17 + $0x78] sm:$0xff]
    %v1157 = vld [vmem:[%s17 + $0x80] sm:$0xff]
    %v1158 = vld [vmem:[%s17 + $0x88] sm:$0xff]
    %v1159 = vld [vmem:[%s17 + $0x90] sm:$0xff]
    %v1160 = vld [vmem:[%s17 + $0x98] sm:$0xff]
    %v1161 = vld [vmem:[%s17 + $0xa0] sm:$0xff]
    %v1162 = vld [vmem:[%s17 + $0xa8] sm:$0xff]
    %v1163 = vld [vmem:[%s17 + $0xb0] sm:$0xff]
    %v1164 = vld [vmem:[%s17 + $0xb8] sm:$0xff]
    %v1165 = vld [vmem:[%s17 + $0xc0] sm:$0xff]
    %v1166 = vld [vmem:[%s17 + $0xc8] sm:$0xff]
    %v1167 = vld [vmem:[%s17 + $0xd0] sm:$0xff]
    %v1168 = vld [vmem:[%s17 + $0xd8] sm:$0xff]
    %v1169 = vld [vmem:[%s17 + $0xe0] sm:$0xff]
    %v1170 = vld [vmem:[%s17 + $0xe8] sm:$0xff]
    %v1172 = vsel %vm1115, %v1136, 0
    %v1175 = vsel %vm1115, %v1140, 0
    %1177 = vmatprep.subr.mxu0 0.0
    %1178 = vmatpush1.msra.mxu0 %v1141
    %1179 = vmatprep.subr.mxu0 0.0
    %1180 = vmatpush1.msra.mxu0 %v1142
    %1181 = vmatprep.subr.mxu0 0.0
    %1182 = vmatpush1.msra.mxu0 %v1143
    %1183 = vmatprep.subr.mxu0 0.0
    %1184 = vmatpush1.msra.mxu0 %v1144
    %1185 = vmatprep.subr.mxu0 0.0
    %1186 = vmatpush1.msra.mxu0 %v1145
    %1187 = vmatprep.subr.mxu0 0.0
    %1188 = vmatpush1.msra.mxu0 %v1146
    %1189 = vmatprep.subr.mxu0 0.0
    %1190 = vmatpush1.msra.mxu0 %v1147
    %1191 = vmatprep.subr.mxu0 0.0
    %1192 = vmatpush1.msra.mxu0 %v1148
    %1193 = vmatprep.subr.mxu0 0.0
    %1194 = vmatpush1.msra.mxu0 %v1149
    %1195 = vmatprep.subr.mxu0 0.0
    %1196 = vmatpush1.msra.mxu0 %v1150
    %1197 = vmatprep.subr.mxu0 0.0
    %1198 = vmatpush1.msra.mxu0 %v1151
    %1199 = vmatprep.subr.mxu0 0.0
    %1200 = vmatpush1.msra.mxu0 %v1152
    %1201 = vmatprep.subr.mxu0 0.0
    %1202 = vmatpush1.msra.mxu0 %v1153
    %1203 = vmatprep.subr.mxu0 0.0
    %1204 = vmatpush1.msra.mxu0 %v1154
    %1205 = vmatprep.subr.mxu0 0.0
    %1206 = vmatpush1.msra.mxu0 %v1155
    %1207 = vmatprep.subr.mxu0 0.0
    %1208 = vmatpush1.msra.mxu0 %v1156
    %1209 = vmatprep.subr.mxu0 0.0
    %1210 = vmatpush1.msra.mxu0 %v1157
    %1211 = vmatprep.subr.mxu0 0.0
    %1212 = vmatpush1.msra.mxu0 %v1158
    %1213 = vmatprep.subr.mxu0 0.0
    %1214 = vmatpush1.msra.mxu0 %v1159
    %1215 = vmatprep.subr.mxu0 0.0
    %1216 = vmatpush1.msra.mxu0 %v1160
    %1217 = vmatprep.subr.mxu0 0.0
    %1218 = vmatpush1.msra.mxu0 %v1161
    %1219 = vmatprep.subr.mxu0 0.0
    %1220 = vmatpush1.msra.mxu0 %v1162
    %1221 = vmatprep.subr.mxu0 0.0
    %1222 = vmatpush1.msra.mxu0 %v1163
    %1223 = vmatprep.subr.mxu0 0.0
    %1224 = vmatpush1.msra.mxu0 %v1164
    %1225 = vmatprep.subr.mxu0 0.0
    %1226 = vmatpush1.msra.mxu0 %v1165
    %1227 = vmatprep.subr.mxu0 0.0
    %1228 = vmatpush1.msra.mxu0 %v1166
    %1229 = vmatprep.subr.mxu0 0.0
    %1230 = vmatpush1.msra.mxu0 %v1167
    %1231 = vmatprep.subr.mxu0 0.0
    %1232 = vmatpush1.msra.mxu0 %v1168
    %1233 = vmatprep.subr.mxu0 0.0
    %1234 = vmatpush1.msra.mxu0 %v1169
    %1235 = vmatprep.subr.mxu0 0.0
    %1236 = vmatpush1.msra.mxu0 %v1170
    %1237 = vmatprep.subr.mxu0 0.0
    %1238 = vmatpush1.msra.mxu0 0.0
    %1239 = vmatprep.subr.mxu0 0.0
    %1240 = vmatpush1.msra.mxu0 0.0
    %1241 = vmatprep.mubr.f32.mxu0 %v1172
    %1242 = vmatmul.mubr.f32.gmra.mrb[0].mxu0 %v1134
    %v1243 = vpop.f32.mrb[0].mxu0
    %v1244 = vadd.f32 0.0, %v1243
    %v1245 = vpop.f32.mrb[0].mxu0
    %1246 = vmatprep.mubr.f32.mxu0 %v1175
    %1247 = vmatmul.mubr.f32.gmra.mrb[0].mxu0 %v1138
    %v1248 = vpop.f32.mrb[0].mxu0
    %v1249 = vadd.f32 0.0, %v1248
    %v1250 = vpop.f32.mrb[0].mxu0
    %1251 = vdwg.mxu0
    %v1252 = vld [vmem:[%s18] sm:$0xff]
    %v1253 = vld [vmem:[%s18 + $0x8] sm:$0xff]
    %v1254 = vld [vmem:[%s18 + $0x10] sm:$0xff]
    %v1255 = vld [vmem:[%s18 + $0x18] sm:$0xff]
    %v1256 = vld [vmem:[%s18 + $0x20] sm:$0xff]
    %v1257 = vld [vmem:[%s18 + $0x28] sm:$0xff]
    %v1258 = vld [vmem:[%s18 + $0x30] sm:$0xff]
    %v1259 = vld [vmem:[%s18 + $0x38] sm:$0xff]
    %v1260 = vld [vmem:[%s18 + $0x40] sm:$0xff]
    %v1261 = vld [vmem:[%s18 + $0x48] sm:$0xff]
    %v1262 = vld [vmem:[%s18 + $0x50] sm:$0xff]
    %v1263 = vld [vmem:[%s18 + $0x58] sm:$0xff]
    %v1264 = vld [vmem:[%s18 + $0x60] sm:$0xff]
    %v1265 = vld [vmem:[%s18 + $0x68] sm:$0xff]
    %v1266 = vld [vmem:[%s18 + $0x70] sm:$0xff]
    %v1267 = vld [vmem:[%s18 + $0x78] sm:$0xff]
    %v1268 = vld [vmem:[%s18 + $0x80] sm:$0xff]
    %v1269 = vld [vmem:[%s18 + $0x88] sm:$0xff]
    %v1270 = vld [vmem:[%s18 + $0x90] sm:$0xff]
    %v1271 = vld [vmem:[%s18 + $0x98] sm:$0xff]
    %v1272 = vld [vmem:[%s18 + $0xa0] sm:$0xff]
    %v1273 = vld [vmem:[%s18 + $0xa8] sm:$0xff]
    %v1274 = vld [vmem:[%s18 + $0xb0] sm:$0xff]
    %v1275 = vld [vmem:[%s18 + $0xb8] sm:$0xff]
    %v1276 = vld [vmem:[%s18 + $0xc0] sm:$0xff]
    %v1277 = vld [vmem:[%s18 + $0xc8] sm:$0xff]
    %v1278 = vld [vmem:[%s18 + $0xd0] sm:$0xff]
    %v1279 = vld [vmem:[%s18 + $0xd8] sm:$0xff]
    %v1280 = vld [vmem:[%s18 + $0xe0] sm:$0xff]
    %v1281 = vld [vmem:[%s18 + $0xe8] sm:$0xff]
    %1282 = vmatprep.subr.mxu0 0.0
    %1283 = vmatpush1.msra.mxu0 %v1252
    %1284 = vmatprep.subr.mxu0 0.0
    %1285 = vmatpush1.msra.mxu0 %v1253
    %1286 = vmatprep.subr.mxu0 0.0
    %1287 = vmatpush1.msra.mxu0 %v1254
    %1288 = vmatprep.subr.mxu0 0.0
    %1289 = vmatpush1.msra.mxu0 %v1255
    %1290 = vmatprep.subr.mxu0 0.0
    %1291 = vmatpush1.msra.mxu0 %v1256
    %1292 = vmatprep.subr.mxu0 0.0
    %1293 = vmatpush1.msra.mxu0 %v1257
    %1294 = vmatprep.subr.mxu0 0.0
    %1295 = vmatpush1.msra.mxu0 %v1258
    %1296 = vmatprep.subr.mxu0 0.0
    %1297 = vmatpush1.msra.mxu0 %v1259
    %1298 = vmatprep.subr.mxu0 0.0
    %1299 = vmatpush1.msra.mxu0 %v1260
    %1300 = vmatprep.subr.mxu0 0.0
    %1301 = vmatpush1.msra.mxu0 %v1261
    %1302 = vmatprep.subr.mxu0 0.0
    %1303 = vmatpush1.msra.mxu0 %v1262
    %1304 = vmatprep.subr.mxu0 0.0
    %1305 = vmatpush1.msra.mxu0 %v1263
    %1306 = vmatprep.subr.mxu0 0.0
    %1307 = vmatpush1.msra.mxu0 %v1264
    %1308 = vmatprep.subr.mxu0 0.0
    %1309 = vmatpush1.msra.mxu0 %v1265
    %1310 = vmatprep.subr.mxu0 0.0
    %1311 = vmatpush1.msra.mxu0 %v1266
    %1312 = vmatprep.subr.mxu0 0.0
    %1313 = vmatpush1.msra.mxu0 %v1267
    %1314 = vmatprep.subr.mxu0 0.0
    %1315 = vmatpush1.msra.mxu0 %v1268
    %1316 = vmatprep.subr.mxu0 0.0
    %1317 = vmatpush1.msra.mxu0 %v1269
    %1318 = vmatprep.subr.mxu0 0.0
    %1319 = vmatpush1.msra.mxu0 %v1270
    %1320 = vmatprep.subr.mxu0 0.0
    %1321 = vmatpush1.msra.mxu0 %v1271
    %1322 = vmatprep.subr.mxu0 0.0
    %1323 = vmatpush1.msra.mxu0 %v1272
    %1324 = vmatprep.subr.mxu0 0.0
    %1325 = vmatpush1.msra.mxu0 %v1273
    %1326 = vmatprep.subr.mxu0 0.0
    %1327 = vmatpush1.msra.mxu0 %v1274
    %1328 = vmatprep.subr.mxu0 0.0
    %1329 = vmatpush1.msra.mxu0 %v1275
    %1330 = vmatprep.subr.mxu0 0.0
    %1331 = vmatpush1.msra.mxu0 %v1276
    %1332 = vmatprep.subr.mxu0 0.0
    %1333 = vmatpush1.msra.mxu0 %v1277
    %1334 = vmatprep.subr.mxu0 0.0
    %1335 = vmatpush1.msra.mxu0 %v1278
    %1336 = vmatprep.subr.mxu0 0.0
    %1337 = vmatpush1.msra.mxu0 %v1279
    %1338 = vmatprep.subr.mxu0 0.0
    %1339 = vmatpush1.msra.mxu0 %v1280
    %1340 = vmatprep.subr.mxu0 0.0
    %1341 = vmatpush1.msra.mxu0 %v1281
    %1342 = vmatprep.subr.mxu0 0.0
    %1343 = vmatpush1.msra.mxu0 0.0
    %1344 = vmatprep.subr.mxu0 0.0
    %1345 = vmatpush1.msra.mxu0 0.0
    %1346 = vmatprep.mubr.f32.mxu0 %v1172
    %1347 = vmatmul.mubr.f32.gmra.mrb[0].mxu0 %v1134
    %v1348 = vpop.f32.mrb[0].mxu0
    %v1349 = vadd.f32 0.0, %v1348
    %v1350 = vpop.f32.mrb[0].mxu0
    %1351 = vmatprep.mubr.f32.mxu0 %v1175
    %1352 = vmatmul.mubr.f32.gmra.mrb[0].mxu0 %v1138
    %v1353 = vpop.f32.mrb[0].mxu0
    %v1354 = vadd.f32 0.0, %v1353
    %v1355 = vpop.f32.mrb[0].mxu0
    %1356 = vdwg.mxu0
    %v1357 = vrcp.pop %v1244
    %v1358 = vmul.f32 %v1349, %v1357
    %v1359 = vrcp.pop %v1249
    %v1360 = vmul.f32 %v1354, %v1359
    %1361 = vst.msk [vmem:[%s19] sm:$0xff] %vm167, %v1358
    %1362 = vst.msk [vmem:[%s19 + $0x8] sm:$0xf] %vm638, %v1360
    // Predicated region
    $region78: #{tpu_custom_call.1} parent=1 // pred_check
      _
    $region79: #{tpu_custom_call.1} parent=1 // pred_check_branch
      %1364 = sbr.rel (0) target = $region81
    $region80: #{tpu_custom_call.1} parent=1 // pred_region
      _
    $region81: #{tpu_custom_call.1} parent=1 // pred_fallthru
      _
    // Predicated region
    $region82: #{tpu_custom_call.1} parent=1 // pred_check
      _
    $region83: #{tpu_custom_call.1} parent=1 // pred_check_branch
      %1366 = sbr.rel (0) target = $region85
    $region84: #{tpu_custom_call.1} parent=1 // pred_region
      _
    $region85: #{tpu_custom_call.1} parent=1 // pred_fallthru
      _
    // Predicated region
    $region86: #{tpu_custom_call.1} parent=1 // pred_check
      _
    $region87: #{tpu_custom_call.1} parent=1 // pred_check_branch
      %1368 = sbr.rel (0) target = $region89
    $region88: #{tpu_custom_call.1} parent=1 // pred_region
      _
    $region89: #{tpu_custom_call.1} parent=1 // pred_fallthru
      _
    // Predicated region
    $region90: #{tpu_custom_call.1} parent=1 // pred_check
      _
    $region91: #{tpu_custom_call.1} parent=1 // pred_check_branch
      %1370 = sbr.rel (0) target = $region93
    $region92: #{tpu_custom_call.1} parent=1 // pred_region
      %s1372 = ssub.s32 512, 512
      %1373 = vsyncadd [#allocation3], %s1372
      %s1374 = sshll.u32 [#allocation2], 4
      %s1375 = int_to_ptr.vmem [resolvable:$true] %s1374
      %1380 = dma.vmem_to_hbm [thread:$0]  %s1375, 512, %s22, [#allocation3], 256, 256, 16
    $region93: #{tpu_custom_call.1} parent=1 // pred_fallthru
      _
    // Predicated region
    $region94: #{tpu_custom_call.1} parent=1 // pred_check
      _
    $region95: #{tpu_custom_call.1} parent=1 // pred_check_branch
      %1382 = sbr.rel (0) target = $region97
    $region96: #{tpu_custom_call.1} parent=1 // pred_region
      %s1384 = ssub.s32 16, 16
      %1385 = vsyncadd [#allocation4], %s1384
      %1388 = dma.smem_to_hbm [#allocation5], 16, %s23, [#allocation4]
    $region97: #{tpu_custom_call.1} parent=1 // pred_fallthru
      _
    // Predicated region
    $region98: #{tpu_custom_call.1} parent=1 // pred_check
      _
    $region99: #{tpu_custom_call.1} parent=1 // pred_check_branch
      %1390 = sbr.rel (0) target = $region101
    $region100: #{tpu_custom_call.1} parent=1 // pred_region
      _
    $region101: #{tpu_custom_call.1} parent=1 // pred_fallthru
      _
    // Predicated region
    $region102: #{tpu_custom_call.1} parent=1 // pred_check
      _
    $region103: #{tpu_custom_call.1} parent=1 // pred_check_branch
      %1392 = sbr.rel (0) target = $region105
    $region104: #{tpu_custom_call.1} parent=1 // pred_region
      _
    $region105: #{tpu_custom_call.1} parent=1 // pred_fallthru
      _
    // Predicated region
    $region106: #{tpu_custom_call.1} parent=1 // pred_check
      _
    $region107: #{tpu_custom_call.1} parent=1 // pred_check_branch
      %1394 = sbr.rel (0) target = $region109
    $region108: #{tpu_custom_call.1} parent=1 // pred_region
      _
    $region109: #{tpu_custom_call.1} parent=1 // pred_fallthru
      _
    // Predicated region
    $region110: #{tpu_custom_call.1} parent=1 // pred_check
      _
    $region111: #{tpu_custom_call.1} parent=1 // pred_check_branch
      %1396 = sbr.rel (0) target = $region113
    $region112: #{tpu_custom_call.1} parent=1 // pred_region
      %1397 = dma.done [#allocation3], 512
    $region113: #{tpu_custom_call.1} parent=1 // pred_fallthru
      _
    // Predicated region
    $region114: #{tpu_custom_call.1} parent=1 // pred_check
      _
    $region115: #{tpu_custom_call.1} parent=1 // pred_check_branch
      %1399 = sbr.rel (0) target = $region117
    $region116: #{tpu_custom_call.1} parent=1 // pred_region
      %1400 = dma.done [#allocation4], 16
    $region117: #{tpu_custom_call.1} parent=1 // pred_fallthru
      _
    %1401 = sfence
    %1402 = vsyncpa [#allocation3], 1
    %1403 = vsyncpa [#allocation4], 1

</llo_original>
